<compile_context>
chip_gen: v7x
topology: tpu7x:2x2x1
jax: 0.10.0
libtpu: 0.0.40
codegen_flags: <defaults>
</compile_context>

<pallas_src>
import functools

import jax
import jax.numpy as jnp
from jax.experimental import pallas as pl
from jax.experimental.pallas import tpu as pltpu

IN_FEATURES = 28 * 28   # 784
HIDDEN = 1000
HIDDEN_P = 1024         # hidden padded to a lane multiple
OUT_FEATURES = 10
OUT_P = 128             # logits padded to one full lane width
NEG_INF = -1e30         # mask value for padded logit columns (applied via b2 padding)


def _round_up(n, m):
    return ((n + m - 1) // m) * m


def mynet_kernel(x_ref, w1_ref, b1_ref, w2_ref, b2_ref, o_ref):
    # fc1: [TB, 784](bf16) @ [784, 1024](bf16) -> f32 accumulation on the MXU
    h = jnp.dot(x_ref[...], w1_ref[...], preferred_element_type=jnp.float32)
    h = h + b1_ref[...]                       # bias in f32
    # sigmoid on the EUP: exp + approximate reciprocal (frees VALU slots)
    e = jnp.exp(-h)
    h = pl.reciprocal(1.0 + e, approx=True)
    # fc2: [TB, 1024](bf16) @ [1024, 128](bf16) -> f32.  Columns 10..127 of w2 are
    # zero and b2 there is -1e30, so padded logits are ~-1e30.
    logits = jnp.dot(h.astype(jnp.bfloat16), w2_ref[...],
                     preferred_element_type=jnp.float32)
    logits = logits + b2_ref[...]
    # log_softmax over the last axis; padded columns contribute exp(-huge) == 0.
    m = jnp.max(logits, axis=-1, keepdims=True)
    shifted = logits - m
    lse = jnp.log(jnp.sum(jnp.exp(shifted), axis=-1, keepdims=True))
    o_ref[...] = (shifted - lse).astype(o_ref.dtype)


def pad_params(w1, b1, w2, b2):
    """Pad params to lane-aligned shapes and cast weights to bf16.

    w1: (784, 1000) -> (784, 1024) bf16, zero-padded columns
    b1: (1000,)     -> (1, 1024)   f32,  zero-padded
    w2: (1000, 10)  -> (1024, 128) bf16, zero-padded rows/cols
    b2: (10,)       -> (1, 128)    f32,  padded columns set to -1e30 (logit mask)
    """
    w1p = jnp.zeros((IN_FEATURES, HIDDEN_P), jnp.bfloat16)
    w1p = w1p.at[:, :HIDDEN].set(w1.astype(jnp.bfloat16))
    b1p = jnp.zeros((1, HIDDEN_P), jnp.float32)
    b1p = b1p.at[:, :HIDDEN].set(b1.reshape(1, HIDDEN).astype(jnp.float32))
    w2p = jnp.zeros((HIDDEN_P, OUT_P), jnp.bfloat16)
    w2p = w2p.at[:HIDDEN, :OUT_FEATURES].set(w2.astype(jnp.bfloat16))
    b2p = jnp.full((1, OUT_P), NEG_INF, jnp.float32)
    b2p = b2p.at[:, :OUT_FEATURES].set(b2.reshape(1, OUT_FEATURES).astype(jnp.float32))
    return w1p, b1p, w2p, b2p


@functools.partial(jax.jit, static_argnames=())
def mynet_forward(x, w1, b1, w2, b2):
    B = x.shape[0]
    w1p, b1p, w2p, b2p = pad_params(w1, b1, w2, b2)

    # Batch tile: 256 rows (full MXU rows on v6e/v7x, 2x128 on v5e); smaller
    # batches fall back to a single 8-aligned tile.
    TB = min(256, _round_up(max(B, 1), 8))
    B_pad = _round_up(B, TB)

    xb = x.astype(jnp.bfloat16)
    if B_pad != B:
        xb = jnp.zeros((B_pad, IN_FEATURES), jnp.bfloat16).at[:B].set(xb)

    out = pl.pallas_call(
        mynet_kernel,
        out_shape=jax.ShapeDtypeStruct((B_pad, OUT_P), jnp.float32),
        grid=(B_pad // TB,),
        in_specs=[
            pl.BlockSpec((TB, IN_FEATURES), lambda i: (i, 0)),      # x tile (pipelined)
            pl.BlockSpec((IN_FEATURES, HIDDEN_P), lambda i: (0, 0)),  # w1 resident
            pl.BlockSpec((1, HIDDEN_P), lambda i: (0, 0)),            # b1 resident
            pl.BlockSpec((HIDDEN_P, OUT_P), lambda i: (0, 0)),        # w2 resident
            pl.BlockSpec((1, OUT_P), lambda i: (0, 0)),               # b2 resident
        ],
        out_specs=pl.BlockSpec((TB, OUT_P), lambda i: (i, 0)),
        compiler_params=pltpu.CompilerParams(
            dimension_semantics=("parallel",),  # v7x: shard batch over both TCs
        ),
    )(xb, w1p, b1p, w2p, b2p)

    # Drop batch padding and the 118 padded logit columns.
    return out[:B, :OUT_FEATURES]


def init_params(key):
    """Deterministic init mimicking torch.nn.Linear's U(-1/sqrt(in), 1/sqrt(in))."""
    k1, k2, k3, k4 = jax.random.split(key, 4)
    bound1 = 1.0 / jnp.sqrt(IN_FEATURES)
    bound2 = 1.0 / jnp.sqrt(HIDDEN)
    # weights stored as [in, out] (transposed vs. PyTorch's [out, in])
    w1 = jax.random.uniform(k1, (IN_FEATURES, HIDDEN), jnp.float32, -bound1, bound1)
    b1 = jax.random.uniform(k2, (HIDDEN,), jnp.float32, -bound1, bound1)
    w2 = jax.random.uniform(k3, (HIDDEN, OUT_FEATURES), jnp.float32, -bound2, bound2)
    b2 = jax.random.uniform(k4, (OUT_FEATURES,), jnp.float32, -bound2, bound2)
    return w1, b1, w2, b2


def reference_forward_matched(x, w1, b1, w2, b2):
    """Pure-JAX reference with the same bf16 input/weight rounding as the kernel."""
    xb = x.astype(jnp.bfloat16).astype(jnp.float32)
    w1b = w1.astype(jnp.bfloat16).astype(jnp.float32)
    w2b = w2.astype(jnp.bfloat16).astype(jnp.float32)
    h = jax.nn.sigmoid(xb @ w1b + b1)
    h = h.astype(jnp.bfloat16).astype(jnp.float32)
    logits = h @ w2b + b2
    return jax.nn.log_softmax(logits, axis=1)


if __name__ == "__main__":
    key = jax.random.PRNGKey(0)
    kx, kp = jax.random.split(key)

    w1, b1, w2, b2 = init_params(kp)

    # Case 1: small aligned batch.
    B = 8
    x = jax.random.normal(kx, (B, IN_FEATURES), jnp.float32)
    out = jax.block_until_ready(mynet_forward(x, w1, b1, w2, b2))
    ref = reference_forward_matched(x, w1, b1, w2, b2)
    assert out.shape == (B, OUT_FEATURES)
    assert bool(jnp.all(jnp.isfinite(out)))
    assert jnp.allclose(out, ref, atol=2e-2, rtol=2e-2)

    # Case 2: ragged batch (exercises batch padding path).
    B2 = 3
    x2 = jax.random.normal(jax.random.fold_in(kx, 1), (B2, IN_FEATURES), jnp.float32)
    out2 = jax.block_until_ready(mynet_forward(x2, w1, b1, w2, b2))
    ref2 = reference_forward_matched(x2, w1, b1, w2, b2)
    assert out2.shape == (B2, OUT_FEATURES)
    assert jnp.allclose(out2, ref2, atol=2e-2, rtol=2e-2)

    print("KERNEL_OK")
</pallas_src>

<mosaic_0001>
module attributes {stable_mosaic.version = 11 : i64} {
  func.func @mynet_kernel(%arg0: i32, %arg1: memref<8x784xbf16, #tpu.memory_space<vmem>>, %arg2: memref<784x1024xbf16, #tpu.memory_space<vmem>>, %arg3: memref<1x1024xf32, #tpu.memory_space<vmem>>, %arg4: memref<1024x128xbf16, #tpu.memory_space<vmem>>, %arg5: memref<1x128xf32, #tpu.memory_space<vmem>>, %arg6: memref<8x128xf32, #tpu.memory_space<vmem>>) attributes {dimension_semantics = [#tpu.dimension_semantics<parallel>], iteration_bounds = array<i64: 1>, scalar_prefetch = 0 : i64, scratch_operands = 0 : i64, tpu.core_type = #tpu.core_type<tc>, window_params = [{transform_indices = @transform_0, window_bounds = array<i64: 8, 784>}, {pipeline_mode = #tpu.pipeline_mode<synchronous>, transform_indices = @transform_1, window_bounds = array<i64: 784, 1024>}, {pipeline_mode = #tpu.pipeline_mode<synchronous>, transform_indices = @transform_2, window_bounds = array<i64: 1, 1024>}, {pipeline_mode = #tpu.pipeline_mode<synchronous>, transform_indices = @transform_3, window_bounds = array<i64: 1024, 128>}, {pipeline_mode = #tpu.pipeline_mode<synchronous>, transform_indices = @transform_4, window_bounds = array<i64: 1, 128>}, {transform_indices = @transform_5, window_bounds = array<i64: 8, 128>}]} {
    %c0 = arith.constant 0 : index
    %c0_0 = arith.constant 0 : index
    %0 = vector.load %arg1[%c0, %c0_0] : memref<8x784xbf16, #tpu.memory_space<vmem>>, vector<8x784xbf16>
    %c0_1 = arith.constant 0 : index
    %c0_2 = arith.constant 0 : index
    %1 = vector.load %arg2[%c0_1, %c0_2] : memref<784x1024xbf16, #tpu.memory_space<vmem>>, vector<784x1024xbf16>
    %cst = arith.constant dense<0.000000e+00> : vector<8x1024xf32>
    %2 = tpu.matmul %0, %1, %cst {dimension_numbers = #tpu.dot_dimension_numbers<[1], [0], [0], [1], [0, 0, 1, 1], [], []>} : vector<8x784xbf16>, vector<784x1024xbf16>, vector<8x1024xf32> -> vector<8x1024xf32>
    %c0_3 = arith.constant 0 : index
    %c0_4 = arith.constant 0 : index
    %3 = vector.load %arg3[%c0_3, %c0_4] : memref<1x1024xf32, #tpu.memory_space<vmem>>, vector<1x1024xf32>
    %4 = vector.broadcast %3 : vector<1x1024xf32> to vector<8x1024xf32>
    %5 = arith.addf %2, %4 : vector<8x1024xf32>
    %cst_5 = arith.constant 0.000000e+00 : f32
    %6 = vector.broadcast %cst_5 : f32 to vector<8x1024xf32>
    %7 = arith.subf %6, %5 : vector<8x1024xf32>
    %8 = math.exp %7 : vector<8x1024xf32>
    %cst_6 = arith.constant 1.000000e+00 : f32
    %9 = vector.broadcast %cst_6 : f32 to vector<8x1024xf32>
    %10 = arith.addf %9, %8 : vector<8x1024xf32>
    %11 = tpu.reciprocal %10 {approx = true} : vector<8x1024xf32> -> vector<8x1024xf32>
    %12 = arith.truncf %11 : vector<8x1024xf32> to vector<8x1024xbf16>
    %c0_7 = arith.constant 0 : index
    %c0_8 = arith.constant 0 : index
    %13 = vector.load %arg4[%c0_7, %c0_8] : memref<1024x128xbf16, #tpu.memory_space<vmem>>, vector<1024x128xbf16>
    %cst_9 = arith.constant dense<0.000000e+00> : vector<8x128xf32>
    %14 = tpu.matmul %12, %13, %cst_9 {dimension_numbers = #tpu.dot_dimension_numbers<[1], [0], [0], [1], [0, 0, 1, 1], [], []>} : vector<8x1024xbf16>, vector<1024x128xbf16>, vector<8x128xf32> -> vector<8x128xf32>
    %c0_10 = arith.constant 0 : index
    %c0_11 = arith.constant 0 : index
    %15 = vector.load %arg5[%c0_10, %c0_11] : memref<1x128xf32, #tpu.memory_space<vmem>>, vector<1x128xf32>
    %16 = vector.broadcast %15 : vector<1x128xf32> to vector<8x128xf32>
    %17 = arith.addf %14, %16 : vector<8x128xf32>
    %cst_12 = arith.constant dense<0xFF800000> : vector<8xf32>
    %18 = vector.multi_reduction <maximumf>, %17, %cst_12 [1] : vector<8x128xf32> to vector<8xf32>
    %19 = vector.shape_cast %18 : vector<8xf32> to vector<8x1xf32>
    %20 = vector.broadcast %19 : vector<8x1xf32> to vector<8x128xf32>
    %21 = arith.subf %17, %20 : vector<8x128xf32>
    %22 = math.exp %21 : vector<8x128xf32>
    %cst_13 = arith.constant dense<0.000000e+00> : vector<8xf32>
    %23 = vector.multi_reduction <add>, %22, %cst_13 [1] : vector<8x128xf32> to vector<8xf32>
    %24 = vector.shape_cast %23 : vector<8xf32> to vector<8x1xf32>
    %25 = math.log %24 : vector<8x1xf32>
    %26 = vector.broadcast %25 : vector<8x1xf32> to vector<8x128xf32>
    %27 = arith.subf %21, %26 : vector<8x128xf32>
    %c0_14 = arith.constant 0 : index
    %c0_15 = arith.constant 0 : index
    %28 = vector.load %arg6[%c0_14, %c0_15] : memref<8x128xf32, #tpu.memory_space<vmem>>, vector<8x128xf32>
    tpu.vector_store %arg6[%c0_14, %c0_15], %27 {strides = array<i32>} : memref<8x128xf32, #tpu.memory_space<vmem>>, vector<8x128xf32>,
    return
  }
  func.func @transform_0(%arg0: i32) -> (i32, i32) {
    %c0_i32 = arith.constant 0 : i32
    %c0_i32_0 = arith.constant 0 : i32
    return %arg0, %c0_i32 : i32, i32
  }
  func.func @transform_1(%arg0: i32) -> (i32, i32) {
    %c0_i32 = arith.constant 0 : i32
    %c0_i32_0 = arith.constant 0 : i32
    %c0_i32_1 = arith.constant 0 : i32
    return %c0_i32, %c0_i32_0 : i32, i32
  }
  func.func @transform_2(%arg0: i32) -> (i32, i32) {
    %c0_i32 = arith.constant 0 : i32
    %c0_i32_0 = arith.constant 0 : i32
    %c0_i32_1 = arith.constant 0 : i32
    return %c0_i32, %c0_i32_0 : i32, i32
  }
  func.func @transform_3(%arg0: i32) -> (i32, i32) {
    %c0_i32 = arith.constant 0 : i32
    %c0_i32_0 = arith.constant 0 : i32
    %c0_i32_1 = arith.constant 0 : i32
    return %c0_i32, %c0_i32_0 : i32, i32
  }
  func.func @transform_4(%arg0: i32) -> (i32, i32) {
    %c0_i32 = arith.constant 0 : i32
    %c0_i32_0 = arith.constant 0 : i32
    %c0_i32_1 = arith.constant 0 : i32
    return %c0_i32, %c0_i32_0 : i32, i32
  }
  func.func @transform_5(%arg0: i32) -> (i32, i32) {
    %c0_i32 = arith.constant 0 : i32
    %c0_i32_0 = arith.constant 0 : i32
    return %arg0, %c0_i32 : i32, i32
  }
}

</mosaic_0001>

<llo_original>
// kernel: mynet_forward.1
$region0: #{mynet_forward.1}
  #allocation0 [shape = 'u32[]', space=smem, size = 0x4, offset = 0x4, fixed_abs, tag = 'smem constant byte address 0x4 - core index']
  #allocation1 [shape = 'u32[144,128]{1,0:T(1,128)}', space=vmem, size = 0x12000, scoped, tag = 'internal scratch']
  %s0 = inlined_call_operand.vmem [shape: bf16[8,784], index: 0, kind: input, shape index: {}]
  %s1 = inlined_call_operand.vmem [shape: bf16[784,1024], index: 1, kind: input, shape index: {}]
  %s2 = inlined_call_operand.vmem [shape: f32[1,1024], index: 2, kind: input, shape index: {}]
  %s3 = inlined_call_operand.vmem [shape: bf16[1024,128], index: 3, kind: input, shape index: {}]
  %s4 = inlined_call_operand.vmem [shape: f32[1,128], index: 4, kind: input, shape index: {}]
  %s5 = inlined_call_operand.hbm [shape: f32[8,128], index: 5, kind: output, shape index: {}]
  %s6 = sld [smem:[#allocation0]]
  $region30: #{mynet_forward.1} parent=0
    _
  %s8 = ssub.s32 1, %s6
  %s9 = scalar_select 0, %s8, %s6
  $region1: #{mynet_forward.1} parent=0
    #allocation2 [shape = 'u8[4096]{0}', space=vmem, size = 0x1000, scoped, tag = 'output window, operand 0, single buffered']
    #allocation3 [shape = 's32[1]{0}', space=sflag, size = 0x4, scoped, tag = 'scoped memory for mynet_forward.1']
    %10 = vsyncpa [#allocation3], 0
    // Predicated region
    $region2: #{mynet_forward.1} parent=1 // pred_check
      _
    $region3: #{mynet_forward.1} parent=1 // pred_check_branch
      %12 = sbr.rel (0) target = $region5
    $region4: #{mynet_forward.1} parent=1 // pred_region
      _
    $region5: #{mynet_forward.1} parent=1 // pred_fallthru
      _
    // Predicated region
    $region6: #{mynet_forward.1} parent=1 // pred_check
      _
    $region7: #{mynet_forward.1} parent=1 // pred_check_branch
      %14 = sbr.rel (0) target = $region9
    $region8: #{mynet_forward.1} parent=1 // pred_region
      _
    $region9: #{mynet_forward.1} parent=1 // pred_fallthru
      _
    // Predicated region
    $region10: #{mynet_forward.1} parent=1 // pred_check
      _
    $region11: #{mynet_forward.1} parent=1 // pred_check_branch
      %16 = sbr.rel (0) target = $region13
    $region12: #{mynet_forward.1} parent=1 // pred_region
      _
    $region13: #{mynet_forward.1} parent=1 // pred_fallthru
      _
    // Predicated region
    $region14: #{mynet_forward.1} parent=1 // pred_check
      _
    $region15: #{mynet_forward.1} parent=1 // pred_check_branch
      %18 = sbr.rel (0) target = $region17
    $region16: #{mynet_forward.1} parent=1 // pred_region
      _
    $region17: #{mynet_forward.1} parent=1 // pred_fallthru
      _
    // Predicated region
    $region18: #{mynet_forward.1} parent=1 // pred_check
      _
    $region19: #{mynet_forward.1} parent=1 // pred_check_branch
      %20 = sbr.rel (0) target = $region21
    $region20: #{mynet_forward.1} parent=1 // pred_region
      _
    $region21: #{mynet_forward.1} parent=1 // pred_fallthru
      _
    %v22 = vld [vmem:[%s0] sm:$0xff]
    %v23 = vld [vmem:[%s0 + $0x8] sm:$0xff]
    %v24 = vld [vmem:[%s0 + $0x10] sm:$0xff]
    %v25 = vld [vmem:[%s0 + $0x18] sm:$0xf]
    %v26 = vld [vmem:[%s1] sm:$0xff]
    %v27 = vld [vmem:[%s1 + $0x8] sm:$0xff]
    %v28 = vld [vmem:[%s1 + $0x10] sm:$0xff]
    %v29 = vld [vmem:[%s1 + $0x18] sm:$0xff]
    %v30 = vld [vmem:[%s1 + $0x20] sm:$0xff]
    %v31 = vld [vmem:[%s1 + $0x28] sm:$0xff]
    %v32 = vld [vmem:[%s1 + $0x30] sm:$0xff]
    %v33 = vld [vmem:[%s1 + $0x38] sm:$0xff]
    %v34 = vld [vmem:[%s1 + $0x40] sm:$0xff]
    %v35 = vld [vmem:[%s1 + $0x48] sm:$0xff]
    %v36 = vld [vmem:[%s1 + $0x50] sm:$0xff]
    %v37 = vld [vmem:[%s1 + $0x58] sm:$0xff]
    %v38 = vld [vmem:[%s1 + $0x60] sm:$0xff]
    %v39 = vld [vmem:[%s1 + $0x68] sm:$0xff]
    %v40 = vld [vmem:[%s1 + $0x70] sm:$0xff]
    %v41 = vld [vmem:[%s1 + $0x78] sm:$0xff]
    %v42 = vld [vmem:[%s1 + $0x80] sm:$0xff]
    %v43 = vld [vmem:[%s1 + $0x88] sm:$0xff]
    %v44 = vld [vmem:[%s1 + $0x90] sm:$0xff]
    %v45 = vld [vmem:[%s1 + $0x98] sm:$0xff]
    %v46 = vld [vmem:[%s1 + $0xa0] sm:$0xff]
    %v47 = vld [vmem:[%s1 + $0xa8] sm:$0xff]
    %v48 = vld [vmem:[%s1 + $0xb0] sm:$0xff]
    %v49 = vld [vmem:[%s1 + $0xb8] sm:$0xff]
    %v50 = vld [vmem:[%s1 + $0xc0] sm:$0xff]
    %v51 = vld [vmem:[%s1 + $0xc8] sm:$0xff]
    %v52 = vld [vmem:[%s1 + $0xd0] sm:$0xff]
    %v53 = vld [vmem:[%s1 + $0xd8] sm:$0xff]
    %v54 = vld [vmem:[%s1 + $0xe0] sm:$0xff]
    %v55 = vld [vmem:[%s1 + $0xe8] sm:$0xff]
    %v56 = vld [vmem:[%s1 + $0xf0] sm:$0xff]
    %v57 = vld [vmem:[%s1 + $0xf8] sm:$0xff]
    %v58 = vld [vmem:[%s1 + $0x100] sm:$0xff]
    %v59 = vld [vmem:[%s1 + $0x108] sm:$0xff]
    %v60 = vld [vmem:[%s1 + $0x110] sm:$0xff]
    %v61 = vld [vmem:[%s1 + $0x118] sm:$0xff]
    %v62 = vld [vmem:[%s1 + $0x120] sm:$0xff]
    %v63 = vld [vmem:[%s1 + $0x128] sm:$0xff]
    %v64 = vld [vmem:[%s1 + $0x130] sm:$0xff]
    %v65 = vld [vmem:[%s1 + $0x138] sm:$0xff]
    %v66 = vld [vmem:[%s1 + $0x140] sm:$0xff]
    %v67 = vld [vmem:[%s1 + $0x148] sm:$0xff]
    %v68 = vld [vmem:[%s1 + $0x150] sm:$0xff]
    %v69 = vld [vmem:[%s1 + $0x158] sm:$0xff]
    %v70 = vld [vmem:[%s1 + $0x160] sm:$0xff]
    %v71 = vld [vmem:[%s1 + $0x168] sm:$0xff]
    %v72 = vld [vmem:[%s1 + $0x170] sm:$0xff]
    %v73 = vld [vmem:[%s1 + $0x178] sm:$0xff]
    %v74 = vld [vmem:[%s1 + $0x180] sm:$0xff]
    %v75 = vld [vmem:[%s1 + $0x188] sm:$0xff]
    %v76 = vld [vmem:[%s1 + $0x190] sm:$0xff]
    %v77 = vld [vmem:[%s1 + $0x198] sm:$0xff]
    %v78 = vld [vmem:[%s1 + $0x1a0] sm:$0xff]
    %v79 = vld [vmem:[%s1 + $0x1a8] sm:$0xff]
    %v80 = vld [vmem:[%s1 + $0x1b0] sm:$0xff]
    %v81 = vld [vmem:[%s1 + $0x1b8] sm:$0xff]
    %v82 = vld [vmem:[%s1 + $0x1c0] sm:$0xff]
    %v83 = vld [vmem:[%s1 + $0x1c8] sm:$0xff]
    %v84 = vld [vmem:[%s1 + $0x1d0] sm:$0xff]
    %v85 = vld [vmem:[%s1 + $0x1d8] sm:$0xff]
    %v86 = vld [vmem:[%s1 + $0x1e0] sm:$0xff]
    %v87 = vld [vmem:[%s1 + $0x1e8] sm:$0xff]
    %v88 = vld [vmem:[%s1 + $0x1f0] sm:$0xff]
    %v89 = vld [vmem:[%s1 + $0x1f8] sm:$0xff]
    %v90 = vld [vmem:[%s1 + $0x200] sm:$0xff]
    %v91 = vld [vmem:[%s1 + $0x208] sm:$0xff]
    %v92 = vld [vmem:[%s1 + $0x210] sm:$0xff]
    %v93 = vld [vmem:[%s1 + $0x218] sm:$0xff]
    %v94 = vld [vmem:[%s1 + $0x220] sm:$0xff]
    %v95 = vld [vmem:[%s1 + $0x228] sm:$0xff]
    %v96 = vld [vmem:[%s1 + $0x230] sm:$0xff]
    %v97 = vld [vmem:[%s1 + $0x238] sm:$0xff]
    %v98 = vld [vmem:[%s1 + $0x240] sm:$0xff]
    %v99 = vld [vmem:[%s1 + $0x248] sm:$0xff]
    %v100 = vld [vmem:[%s1 + $0x250] sm:$0xff]
    %v101 = vld [vmem:[%s1 + $0x258] sm:$0xff]
    %v102 = vld [vmem:[%s1 + $0x260] sm:$0xff]
    %v103 = vld [vmem:[%s1 + $0x268] sm:$0xff]
    %v104 = vld [vmem:[%s1 + $0x270] sm:$0xff]
    %v105 = vld [vmem:[%s1 + $0x278] sm:$0xff]
    %v106 = vld [vmem:[%s1 + $0x280] sm:$0xff]
    %v107 = vld [vmem:[%s1 + $0x288] sm:$0xff]
    %v108 = vld [vmem:[%s1 + $0x290] sm:$0xff]
    %v109 = vld [vmem:[%s1 + $0x298] sm:$0xff]
    %v110 = vld [vmem:[%s1 + $0x2a0] sm:$0xff]
    %v111 = vld [vmem:[%s1 + $0x2a8] sm:$0xff]
    %v112 = vld [vmem:[%s1 + $0x2b0] sm:$0xff]
    %v113 = vld [vmem:[%s1 + $0x2b8] sm:$0xff]
    %v114 = vld [vmem:[%s1 + $0x2c0] sm:$0xff]
    %v115 = vld [vmem:[%s1 + $0x2c8] sm:$0xff]
    %v116 = vld [vmem:[%s1 + $0x2d0] sm:$0xff]
    %v117 = vld [vmem:[%s1 + $0x2d8] sm:$0xff]
    %v118 = vld [vmem:[%s1 + $0x2e0] sm:$0xff]
    %v119 = vld [vmem:[%s1 + $0x2e8] sm:$0xff]
    %v120 = vld [vmem:[%s1 + $0x2f0] sm:$0xff]
    %v121 = vld [vmem:[%s1 + $0x2f8] sm:$0xff]
    %v122 = vld [vmem:[%s1 + $0x300] sm:$0xff]
    %v123 = vld [vmem:[%s1 + $0x308] sm:$0xff]
    %v124 = vld [vmem:[%s1 + $0x310] sm:$0xff]
    %v125 = vld [vmem:[%s1 + $0x318] sm:$0xff]
    %v126 = vld [vmem:[%s1 + $0x320] sm:$0xff]
    %v127 = vld [vmem:[%s1 + $0x328] sm:$0xff]
    %v128 = vld [vmem:[%s1 + $0x330] sm:$0xff]
    %v129 = vld [vmem:[%s1 + $0x338] sm:$0xff]
    %v130 = vld [vmem:[%s1 + $0x340] sm:$0xff]
    %v131 = vld [vmem:[%s1 + $0x348] sm:$0xff]
    %v132 = vld [vmem:[%s1 + $0x350] sm:$0xff]
    %v133 = vld [vmem:[%s1 + $0x358] sm:$0xff]
    %v134 = vld [vmem:[%s1 + $0x360] sm:$0xff]
    %v135 = vld [vmem:[%s1 + $0x368] sm:$0xff]
    %v136 = vld [vmem:[%s1 + $0x370] sm:$0xff]
    %v137 = vld [vmem:[%s1 + $0x378] sm:$0xff]
    %v138 = vld [vmem:[%s1 + $0x380] sm:$0xff]
    %v139 = vld [vmem:[%s1 + $0x388] sm:$0xff]
    %v140 = vld [vmem:[%s1 + $0x390] sm:$0xff]
    %v141 = vld [vmem:[%s1 + $0x398] sm:$0xff]
    %v142 = vld [vmem:[%s1 + $0x3a0] sm:$0xff]
    %v143 = vld [vmem:[%s1 + $0x3a8] sm:$0xff]
    %v144 = vld [vmem:[%s1 + $0x3b0] sm:$0xff]
    %v145 = vld [vmem:[%s1 + $0x3b8] sm:$0xff]
    %v146 = vld [vmem:[%s1 + $0x3c0] sm:$0xff]
    %v147 = vld [vmem:[%s1 + $0x3c8] sm:$0xff]
    %v148 = vld [vmem:[%s1 + $0x3d0] sm:$0xff]
    %v149 = vld [vmem:[%s1 + $0x3d8] sm:$0xff]
    %v150 = vld [vmem:[%s1 + $0x3e0] sm:$0xff]
    %v151 = vld [vmem:[%s1 + $0x3e8] sm:$0xff]
    %v152 = vld [vmem:[%s1 + $0x3f0] sm:$0xff]
    %v153 = vld [vmem:[%s1 + $0x3f8] sm:$0xff]
    %v154 = vld [vmem:[%s1 + $0x400] sm:$0xff]
    %v155 = vld [vmem:[%s1 + $0x408] sm:$0xff]
    %v156 = vld [vmem:[%s1 + $0x410] sm:$0xff]
    %v157 = vld [vmem:[%s1 + $0x418] sm:$0xff]
    %v158 = vld [vmem:[%s1 + $0x420] sm:$0xff]
    %v159 = vld [vmem:[%s1 + $0x428] sm:$0xff]
    %v160 = vld [vmem:[%s1 + $0x430] sm:$0xff]
    %v161 = vld [vmem:[%s1 + $0x438] sm:$0xff]
    %v162 = vld [vmem:[%s1 + $0x440] sm:$0xff]
    %v163 = vld [vmem:[%s1 + $0x448] sm:$0xff]
    %v164 = vld [vmem:[%s1 + $0x450] sm:$0xff]
    %v165 = vld [vmem:[%s1 + $0x458] sm:$0xff]
    %v166 = vld [vmem:[%s1 + $0x460] sm:$0xff]
    %v167 = vld [vmem:[%s1 + $0x468] sm:$0xff]
    %v168 = vld [vmem:[%s1 + $0x470] sm:$0xff]
    %v169 = vld [vmem:[%s1 + $0x478] sm:$0xff]
    %v170 = vld [vmem:[%s1 + $0x480] sm:$0xff]
    %v171 = vld [vmem:[%s1 + $0x488] sm:$0xff]
    %v172 = vld [vmem:[%s1 + $0x490] sm:$0xff]
    %v173 = vld [vmem:[%s1 + $0x498] sm:$0xff]
    %v174 = vld [vmem:[%s1 + $0x4a0] sm:$0xff]
    %v175 = vld [vmem:[%s1 + $0x4a8] sm:$0xff]
    %v176 = vld [vmem:[%s1 + $0x4b0] sm:$0xff]
    %v177 = vld [vmem:[%s1 + $0x4b8] sm:$0xff]
    %v178 = vld [vmem:[%s1 + $0x4c0] sm:$0xff]
    %v179 = vld [vmem:[%s1 + $0x4c8] sm:$0xff]
    %v180 = vld [vmem:[%s1 + $0x4d0] sm:$0xff]
    %v181 = vld [vmem:[%s1 + $0x4d8] sm:$0xff]
    %v182 = vld [vmem:[%s1 + $0x4e0] sm:$0xff]
    %v183 = vld [vmem:[%s1 + $0x4e8] sm:$0xff]
    %v184 = vld [vmem:[%s1 + $0x4f0] sm:$0xff]
    %v185 = vld [vmem:[%s1 + $0x4f8] sm:$0xff]
    %v186 = vld [vmem:[%s1 + $0x500] sm:$0xff]
    %v187 = vld [vmem:[%s1 + $0x508] sm:$0xff]
    %v188 = vld [vmem:[%s1 + $0x510] sm:$0xff]
    %v189 = vld [vmem:[%s1 + $0x518] sm:$0xff]
    %v190 = vld [vmem:[%s1 + $0x520] sm:$0xff]
    %v191 = vld [vmem:[%s1 + $0x528] sm:$0xff]
    %v192 = vld [vmem:[%s1 + $0x530] sm:$0xff]
    %v193 = vld [vmem:[%s1 + $0x538] sm:$0xff]
    %v194 = vld [vmem:[%s1 + $0x540] sm:$0xff]
    %v195 = vld [vmem:[%s1 + $0x548] sm:$0xff]
    %v196 = vld [vmem:[%s1 + $0x550] sm:$0xff]
    %v197 = vld [vmem:[%s1 + $0x558] sm:$0xff]
    %v198 = vld [vmem:[%s1 + $0x560] sm:$0xff]
    %v199 = vld [vmem:[%s1 + $0x568] sm:$0xff]
    %v200 = vld [vmem:[%s1 + $0x570] sm:$0xff]
    %v201 = vld [vmem:[%s1 + $0x578] sm:$0xff]
    %v202 = vld [vmem:[%s1 + $0x580] sm:$0xff]
    %v203 = vld [vmem:[%s1 + $0x588] sm:$0xff]
    %v204 = vld [vmem:[%s1 + $0x590] sm:$0xff]
    %v205 = vld [vmem:[%s1 + $0x598] sm:$0xff]
    %v206 = vld [vmem:[%s1 + $0x5a0] sm:$0xff]
    %v207 = vld [vmem:[%s1 + $0x5a8] sm:$0xff]
    %v208 = vld [vmem:[%s1 + $0x5b0] sm:$0xff]
    %v209 = vld [vmem:[%s1 + $0x5b8] sm:$0xff]
    %v210 = vld [vmem:[%s1 + $0x5c0] sm:$0xff]
    %v211 = vld [vmem:[%s1 + $0x5c8] sm:$0xff]
    %v212 = vld [vmem:[%s1 + $0x5d0] sm:$0xff]
    %v213 = vld [vmem:[%s1 + $0x5d8] sm:$0xff]
    %v214 = vld [vmem:[%s1 + $0x5e0] sm:$0xff]
    %v215 = vld [vmem:[%s1 + $0x5e8] sm:$0xff]
    %v216 = vld [vmem:[%s1 + $0x5f0] sm:$0xff]
    %v217 = vld [vmem:[%s1 + $0x5f8] sm:$0xff]
    %v218 = vld [vmem:[%s1 + $0x600] sm:$0xff]
    %v219 = vld [vmem:[%s1 + $0x608] sm:$0xff]
    %v220 = vld [vmem:[%s1 + $0x610] sm:$0xff]
    %v221 = vld [vmem:[%s1 + $0x618] sm:$0xff]
    %v222 = vld [vmem:[%s1 + $0x620] sm:$0xff]
    %v223 = vld [vmem:[%s1 + $0x628] sm:$0xff]
    %v224 = vld [vmem:[%s1 + $0x630] sm:$0xff]
    %v225 = vld [vmem:[%s1 + $0x638] sm:$0xff]
    %v226 = vld [vmem:[%s1 + $0x640] sm:$0xff]
    %v227 = vld [vmem:[%s1 + $0x648] sm:$0xff]
    %v228 = vld [vmem:[%s1 + $0x650] sm:$0xff]
    %v229 = vld [vmem:[%s1 + $0x658] sm:$0xff]
    %v230 = vld [vmem:[%s1 + $0x660] sm:$0xff]
    %v231 = vld [vmem:[%s1 + $0x668] sm:$0xff]
    %v232 = vld [vmem:[%s1 + $0x670] sm:$0xff]
    %v233 = vld [vmem:[%s1 + $0x678] sm:$0xff]
    %v234 = vld [vmem:[%s1 + $0x680] sm:$0xff]
    %v235 = vld [vmem:[%s1 + $0x688] sm:$0xff]
    %v236 = vld [vmem:[%s1 + $0x690] sm:$0xff]
    %v237 = vld [vmem:[%s1 + $0x698] sm:$0xff]
    %v238 = vld [vmem:[%s1 + $0x6a0] sm:$0xff]
    %v239 = vld [vmem:[%s1 + $0x6a8] sm:$0xff]
    %v240 = vld [vmem:[%s1 + $0x6b0] sm:$0xff]
    %v241 = vld [vmem:[%s1 + $0x6b8] sm:$0xff]
    %v242 = vld [vmem:[%s1 + $0x6c0] sm:$0xff]
    %v243 = vld [vmem:[%s1 + $0x6c8] sm:$0xff]
    %v244 = vld [vmem:[%s1 + $0x6d0] sm:$0xff]
    %v245 = vld [vmem:[%s1 + $0x6d8] sm:$0xff]
    %v246 = vld [vmem:[%s1 + $0x6e0] sm:$0xff]
    %v247 = vld [vmem:[%s1 + $0x6e8] sm:$0xff]
    %v248 = vld [vmem:[%s1 + $0x6f0] sm:$0xff]
    %v249 = vld [vmem:[%s1 + $0x6f8] sm:$0xff]
    %v250 = vld [vmem:[%s1 + $0x700] sm:$0xff]
    %v251 = vld [vmem:[%s1 + $0x708] sm:$0xff]
    %v252 = vld [vmem:[%s1 + $0x710] sm:$0xff]
    %v253 = vld [vmem:[%s1 + $0x718] sm:$0xff]
    %v254 = vld [vmem:[%s1 + $0x720] sm:$0xff]
    %v255 = vld [vmem:[%s1 + $0x728] sm:$0xff]
    %v256 = vld [vmem:[%s1 + $0x730] sm:$0xff]
    %v257 = vld [vmem:[%s1 + $0x738] sm:$0xff]
    %v258 = vld [vmem:[%s1 + $0x740] sm:$0xff]
    %v259 = vld [vmem:[%s1 + $0x748] sm:$0xff]
    %v260 = vld [vmem:[%s1 + $0x750] sm:$0xff]
    %v261 = vld [vmem:[%s1 + $0x758] sm:$0xff]
    %v262 = vld [vmem:[%s1 + $0x760] sm:$0xff]
    %v263 = vld [vmem:[%s1 + $0x768] sm:$0xff]
    %v264 = vld [vmem:[%s1 + $0x770] sm:$0xff]
    %v265 = vld [vmem:[%s1 + $0x778] sm:$0xff]
    %v266 = vld [vmem:[%s1 + $0x780] sm:$0xff]
    %v267 = vld [vmem:[%s1 + $0x788] sm:$0xff]
    %v268 = vld [vmem:[%s1 + $0x790] sm:$0xff]
    %v269 = vld [vmem:[%s1 + $0x798] sm:$0xff]
    %v270 = vld [vmem:[%s1 + $0x7a0] sm:$0xff]
    %v271 = vld [vmem:[%s1 + $0x7a8] sm:$0xff]
    %v272 = vld [vmem:[%s1 + $0x7b0] sm:$0xff]
    %v273 = vld [vmem:[%s1 + $0x7b8] sm:$0xff]
    %v274 = vld [vmem:[%s1 + $0x7c0] sm:$0xff]
    %v275 = vld [vmem:[%s1 + $0x7c8] sm:$0xff]
    %v276 = vld [vmem:[%s1 + $0x7d0] sm:$0xff]
    %v277 = vld [vmem:[%s1 + $0x7d8] sm:$0xff]
    %v278 = vld [vmem:[%s1 + $0x7e0] sm:$0xff]
    %v279 = vld [vmem:[%s1 + $0x7e8] sm:$0xff]
    %v280 = vld [vmem:[%s1 + $0x7f0] sm:$0xff]
    %v281 = vld [vmem:[%s1 + $0x7f8] sm:$0xff]
    %v282 = vld [vmem:[%s1 + $0x800] sm:$0xff]
    %v283 = vld [vmem:[%s1 + $0x808] sm:$0xff]
    %v284 = vld [vmem:[%s1 + $0x810] sm:$0xff]
    %v285 = vld [vmem:[%s1 + $0x818] sm:$0xff]
    %v286 = vld [vmem:[%s1 + $0x820] sm:$0xff]
    %v287 = vld [vmem:[%s1 + $0x828] sm:$0xff]
    %v288 = vld [vmem:[%s1 + $0x830] sm:$0xff]
    %v289 = vld [vmem:[%s1 + $0x838] sm:$0xff]
    %v290 = vld [vmem:[%s1 + $0x840] sm:$0xff]
    %v291 = vld [vmem:[%s1 + $0x848] sm:$0xff]
    %v292 = vld [vmem:[%s1 + $0x850] sm:$0xff]
    %v293 = vld [vmem:[%s1 + $0x858] sm:$0xff]
    %v294 = vld [vmem:[%s1 + $0x860] sm:$0xff]
    %v295 = vld [vmem:[%s1 + $0x868] sm:$0xff]
    %v296 = vld [vmem:[%s1 + $0x870] sm:$0xff]
    %v297 = vld [vmem:[%s1 + $0x878] sm:$0xff]
    %v298 = vld [vmem:[%s1 + $0x880] sm:$0xff]
    %v299 = vld [vmem:[%s1 + $0x888] sm:$0xff]
    %v300 = vld [vmem:[%s1 + $0x890] sm:$0xff]
    %v301 = vld [vmem:[%s1 + $0x898] sm:$0xff]
    %v302 = vld [vmem:[%s1 + $0x8a0] sm:$0xff]
    %v303 = vld [vmem:[%s1 + $0x8a8] sm:$0xff]
    %v304 = vld [vmem:[%s1 + $0x8b0] sm:$0xff]
    %v305 = vld [vmem:[%s1 + $0x8b8] sm:$0xff]
    %v306 = vld [vmem:[%s1 + $0x8c0] sm:$0xff]
    %v307 = vld [vmem:[%s1 + $0x8c8] sm:$0xff]
    %v308 = vld [vmem:[%s1 + $0x8d0] sm:$0xff]
    %v309 = vld [vmem:[%s1 + $0x8d8] sm:$0xff]
    %v310 = vld [vmem:[%s1 + $0x8e0] sm:$0xff]
    %v311 = vld [vmem:[%s1 + $0x8e8] sm:$0xff]
    %v312 = vld [vmem:[%s1 + $0x8f0] sm:$0xff]
    %v313 = vld [vmem:[%s1 + $0x8f8] sm:$0xff]
    %v314 = vld [vmem:[%s1 + $0x900] sm:$0xff]
    %v315 = vld [vmem:[%s1 + $0x908] sm:$0xff]
    %v316 = vld [vmem:[%s1 + $0x910] sm:$0xff]
    %v317 = vld [vmem:[%s1 + $0x918] sm:$0xff]
    %v318 = vld [vmem:[%s1 + $0x920] sm:$0xff]
    %v319 = vld [vmem:[%s1 + $0x928] sm:$0xff]
    %v320 = vld [vmem:[%s1 + $0x930] sm:$0xff]
    %v321 = vld [vmem:[%s1 + $0x938] sm:$0xff]
    %v322 = vld [vmem:[%s1 + $0x940] sm:$0xff]
    %v323 = vld [vmem:[%s1 + $0x948] sm:$0xff]
    %v324 = vld [vmem:[%s1 + $0x950] sm:$0xff]
    %v325 = vld [vmem:[%s1 + $0x958] sm:$0xff]
    %v326 = vld [vmem:[%s1 + $0x960] sm:$0xff]
    %v327 = vld [vmem:[%s1 + $0x968] sm:$0xff]
    %v328 = vld [vmem:[%s1 + $0x970] sm:$0xff]
    %v329 = vld [vmem:[%s1 + $0x978] sm:$0xff]
    %v330 = vld [vmem:[%s1 + $0x980] sm:$0xff]
    %v331 = vld [vmem:[%s1 + $0x988] sm:$0xff]
    %v332 = vld [vmem:[%s1 + $0x990] sm:$0xff]
    %v333 = vld [vmem:[%s1 + $0x998] sm:$0xff]
    %v334 = vld [vmem:[%s1 + $0x9a0] sm:$0xff]
    %v335 = vld [vmem:[%s1 + $0x9a8] sm:$0xff]
    %v336 = vld [vmem:[%s1 + $0x9b0] sm:$0xff]
    %v337 = vld [vmem:[%s1 + $0x9b8] sm:$0xff]
    %v338 = vld [vmem:[%s1 + $0x9c0] sm:$0xff]
    %v339 = vld [vmem:[%s1 + $0x9c8] sm:$0xff]
    %v340 = vld [vmem:[%s1 + $0x9d0] sm:$0xff]
    %v341 = vld [vmem:[%s1 + $0x9d8] sm:$0xff]
    %v342 = vld [vmem:[%s1 + $0x9e0] sm:$0xff]
    %v343 = vld [vmem:[%s1 + $0x9e8] sm:$0xff]
    %v344 = vld [vmem:[%s1 + $0x9f0] sm:$0xff]
    %v345 = vld [vmem:[%s1 + $0x9f8] sm:$0xff]
    %v346 = vld [vmem:[%s1 + $0xa00] sm:$0xff]
    %v347 = vld [vmem:[%s1 + $0xa08] sm:$0xff]
    %v348 = vld [vmem:[%s1 + $0xa10] sm:$0xff]
    %v349 = vld [vmem:[%s1 + $0xa18] sm:$0xff]
    %v350 = vld [vmem:[%s1 + $0xa20] sm:$0xff]
    %v351 = vld [vmem:[%s1 + $0xa28] sm:$0xff]
    %v352 = vld [vmem:[%s1 + $0xa30] sm:$0xff]
    %v353 = vld [vmem:[%s1 + $0xa38] sm:$0xff]
    %v354 = vld [vmem:[%s1 + $0xa40] sm:$0xff]
    %v355 = vld [vmem:[%s1 + $0xa48] sm:$0xff]
    %v356 = vld [vmem:[%s1 + $0xa50] sm:$0xff]
    %v357 = vld [vmem:[%s1 + $0xa58] sm:$0xff]
    %v358 = vld [vmem:[%s1 + $0xa60] sm:$0xff]
    %v359 = vld [vmem:[%s1 + $0xa68] sm:$0xff]
    %v360 = vld [vmem:[%s1 + $0xa70] sm:$0xff]
    %v361 = vld [vmem:[%s1 + $0xa78] sm:$0xff]
    %v362 = vld [vmem:[%s1 + $0xa80] sm:$0xff]
    %v363 = vld [vmem:[%s1 + $0xa88] sm:$0xff]
    %v364 = vld [vmem:[%s1 + $0xa90] sm:$0xff]
    %v365 = vld [vmem:[%s1 + $0xa98] sm:$0xff]
    %v366 = vld [vmem:[%s1 + $0xaa0] sm:$0xff]
    %v367 = vld [vmem:[%s1 + $0xaa8] sm:$0xff]
    %v368 = vld [vmem:[%s1 + $0xab0] sm:$0xff]
    %v369 = vld [vmem:[%s1 + $0xab8] sm:$0xff]
    %v370 = vld [vmem:[%s1 + $0xac0] sm:$0xff]
    %v371 = vld [vmem:[%s1 + $0xac8] sm:$0xff]
    %v372 = vld [vmem:[%s1 + $0xad0] sm:$0xff]
    %v373 = vld [vmem:[%s1 + $0xad8] sm:$0xff]
    %v374 = vld [vmem:[%s1 + $0xae0] sm:$0xff]
    %v375 = vld [vmem:[%s1 + $0xae8] sm:$0xff]
    %v376 = vld [vmem:[%s1 + $0xaf0] sm:$0xff]
    %v377 = vld [vmem:[%s1 + $0xaf8] sm:$0xff]
    %v378 = vld [vmem:[%s1 + $0xb00] sm:$0xff]
    %v379 = vld [vmem:[%s1 + $0xb08] sm:$0xff]
    %v380 = vld [vmem:[%s1 + $0xb10] sm:$0xff]
    %v381 = vld [vmem:[%s1 + $0xb18] sm:$0xff]
    %v382 = vld [vmem:[%s1 + $0xb20] sm:$0xff]
    %v383 = vld [vmem:[%s1 + $0xb28] sm:$0xff]
    %v384 = vld [vmem:[%s1 + $0xb30] sm:$0xff]
    %v385 = vld [vmem:[%s1 + $0xb38] sm:$0xff]
    %v386 = vld [vmem:[%s1 + $0xb40] sm:$0xff]
    %v387 = vld [vmem:[%s1 + $0xb48] sm:$0xff]
    %v388 = vld [vmem:[%s1 + $0xb50] sm:$0xff]
    %v389 = vld [vmem:[%s1 + $0xb58] sm:$0xff]
    %v390 = vld [vmem:[%s1 + $0xb60] sm:$0xff]
    %v391 = vld [vmem:[%s1 + $0xb68] sm:$0xff]
    %v392 = vld [vmem:[%s1 + $0xb70] sm:$0xff]
    %v393 = vld [vmem:[%s1 + $0xb78] sm:$0xff]
    %v394 = vld [vmem:[%s1 + $0xb80] sm:$0xff]
    %v395 = vld [vmem:[%s1 + $0xb88] sm:$0xff]
    %v396 = vld [vmem:[%s1 + $0xb90] sm:$0xff]
    %v397 = vld [vmem:[%s1 + $0xb98] sm:$0xff]
    %v398 = vld [vmem:[%s1 + $0xba0] sm:$0xff]
    %v399 = vld [vmem:[%s1 + $0xba8] sm:$0xff]
    %v400 = vld [vmem:[%s1 + $0xbb0] sm:$0xff]
    %v401 = vld [vmem:[%s1 + $0xbb8] sm:$0xff]
    %v402 = vld [vmem:[%s1 + $0xbc0] sm:$0xff]
    %v403 = vld [vmem:[%s1 + $0xbc8] sm:$0xff]
    %v404 = vld [vmem:[%s1 + $0xbd0] sm:$0xff]
    %v405 = vld [vmem:[%s1 + $0xbd8] sm:$0xff]
    %v406 = vld [vmem:[%s1 + $0xbe0] sm:$0xff]
    %v407 = vld [vmem:[%s1 + $0xbe8] sm:$0xff]
    %v408 = vld [vmem:[%s1 + $0xbf0] sm:$0xff]
    %v409 = vld [vmem:[%s1 + $0xbf8] sm:$0xff]
    %v410 = vld [vmem:[%s1 + $0xc00] sm:$0xff]
    %v411 = vld [vmem:[%s1 + $0xc08] sm:$0xff]
    %v412 = vld [vmem:[%s1 + $0xc10] sm:$0xff]
    %v413 = vld [vmem:[%s1 + $0xc18] sm:$0xff]
    %v414 = vld [vmem:[%s1 + $0xc20] sm:$0xff]
    %v415 = vld [vmem:[%s1 + $0xc28] sm:$0xff]
    %v416 = vld [vmem:[%s1 + $0xc30] sm:$0xff]
    %v417 = vld [vmem:[%s1 + $0xc38] sm:$0xff]
    %v418 = vld [vmem:[%s2] sm:$0xff]
    %v420 = vlaneseq
    %v421 = vshrl.u32 %v420, 7
    %v422 = vsub.s32 0, %v421
    %v423 = vrot.slane %v418, %v422
    %v424 = vlaneseq
    %v425 = vshrl.u32 %v424, 7
    %v426 = vsub.s32 1, %v425
    %v427 = vrot.slane %v418, %v426
    %v428 = vlaneseq
    %v429 = vshrl.u32 %v428, 7
    %v430 = vsub.s32 2, %v429
    %v431 = vrot.slane %v418, %v430
    %v432 = vlaneseq
    %v433 = vshrl.u32 %v432, 7
    %v434 = vsub.s32 3, %v433
    %v435 = vrot.slane %v418, %v434
    %v436 = vlaneseq
    %v437 = vshrl.u32 %v436, 7
    %v438 = vsub.s32 4, %v437
    %v439 = vrot.slane %v418, %v438
    %v440 = vlaneseq
    %v441 = vshrl.u32 %v440, 7
    %v442 = vsub.s32 5, %v441
    %v443 = vrot.slane %v418, %v442
    %v444 = vlaneseq
    %v445 = vshrl.u32 %v444, 7
    %v446 = vsub.s32 6, %v445
    %v447 = vrot.slane %v418, %v446
    %v448 = vlaneseq
    %v449 = vshrl.u32 %v448, 7
    %v450 = vsub.s32 7, %v449
    %v451 = vrot.slane %v418, %v450
    %v464 = vunpack.c.l.b16 %v22
    %v465 = vunpack.c.h.b16 %v22
    %v466 = vunpack.c.l.b16 %v23
    %v467 = vunpack.c.h.b16 %v23
    %v468 = vunpack.c.l.b16 %v24
    %v469 = vunpack.c.h.b16 %v24
    %v470 = vunpack.c.l.b16 %v25
    %v471 = vpack.c.b16 %v464, %v464
    %v472 = vpack.c.b16 %v465, %v465
    %v473 = vpack.c.b16 %v466, %v466
    %v474 = vpack.c.b16 %v467, %v467
    %v475 = vpack.c.b16 %v468, %v468
    %v476 = vpack.c.b16 %v469, %v469
    %v477 = vpack.c.b16 %v470, %v470
    %v876 = vunpack.c.l.b16 %v26
    %v877 = vunpack.c.h.b16 %v26
    %v878 = vunpack.c.l.b16 %v27
    %v879 = vunpack.c.h.b16 %v27
    %v880 = vunpack.c.l.b16 %v28
    %v881 = vunpack.c.h.b16 %v28
    %v882 = vunpack.c.l.b16 %v29
    %v883 = vunpack.c.h.b16 %v29
    %v884 = vunpack.c.l.b16 %v30
    %v885 = vunpack.c.h.b16 %v30
    %v886 = vunpack.c.l.b16 %v31
    %v887 = vunpack.c.h.b16 %v31
    %v888 = vunpack.c.l.b16 %v32
    %v889 = vunpack.c.h.b16 %v32
    %v890 = vunpack.c.l.b16 %v33
    %v891 = vunpack.c.h.b16 %v33
    %v892 = vunpack.c.l.b16 %v34
    %v893 = vunpack.c.h.b16 %v34
    %v894 = vunpack.c.l.b16 %v35
    %v895 = vunpack.c.h.b16 %v35
    %v896 = vunpack.c.l.b16 %v36
    %v897 = vunpack.c.h.b16 %v36
    %v898 = vunpack.c.l.b16 %v37
    %v899 = vunpack.c.h.b16 %v37
    %v900 = vunpack.c.l.b16 %v38
    %v901 = vunpack.c.h.b16 %v38
    %v902 = vunpack.c.l.b16 %v39
    %v903 = vunpack.c.h.b16 %v39
    %v904 = vunpack.c.l.b16 %v40
    %v905 = vunpack.c.h.b16 %v40
    %v906 = vunpack.c.l.b16 %v41
    %v907 = vunpack.c.h.b16 %v41
    %v908 = vunpack.c.l.b16 %v42
    %v909 = vunpack.c.h.b16 %v42
    %v910 = vunpack.c.l.b16 %v43
    %v911 = vunpack.c.h.b16 %v43
    %v912 = vunpack.c.l.b16 %v44
    %v913 = vunpack.c.h.b16 %v44
    %v914 = vunpack.c.l.b16 %v45
    %v915 = vunpack.c.h.b16 %v45
    %v916 = vunpack.c.l.b16 %v46
    %v917 = vunpack.c.h.b16 %v46
    %v918 = vunpack.c.l.b16 %v47
    %v919 = vunpack.c.h.b16 %v47
    %v920 = vunpack.c.l.b16 %v48
    %v921 = vunpack.c.h.b16 %v48
    %v922 = vunpack.c.l.b16 %v49
    %v923 = vunpack.c.h.b16 %v49
    %v924 = vunpack.c.l.b16 %v50
    %v925 = vunpack.c.h.b16 %v50
    %v926 = vunpack.c.l.b16 %v51
    %v927 = vunpack.c.h.b16 %v51
    %v928 = vunpack.c.l.b16 %v52
    %v929 = vunpack.c.h.b16 %v52
    %v930 = vunpack.c.l.b16 %v53
    %v931 = vunpack.c.h.b16 %v53
    %v932 = vunpack.c.l.b16 %v54
    %v933 = vunpack.c.h.b16 %v54
    %v934 = vunpack.c.l.b16 %v55
    %v935 = vunpack.c.h.b16 %v55
    %v936 = vunpack.c.l.b16 %v56
    %v937 = vunpack.c.h.b16 %v56
    %v938 = vunpack.c.l.b16 %v57
    %v939 = vunpack.c.h.b16 %v57
    %v940 = vunpack.c.l.b16 %v58
    %v941 = vunpack.c.h.b16 %v58
    %v942 = vunpack.c.l.b16 %v59
    %v943 = vunpack.c.h.b16 %v59
    %v944 = vunpack.c.l.b16 %v60
    %v945 = vunpack.c.h.b16 %v60
    %v946 = vunpack.c.l.b16 %v61
    %v947 = vunpack.c.h.b16 %v61
    %v948 = vunpack.c.l.b16 %v62
    %v949 = vunpack.c.h.b16 %v62
    %v950 = vunpack.c.l.b16 %v63
    %v951 = vunpack.c.h.b16 %v63
    %v952 = vunpack.c.l.b16 %v64
    %v953 = vunpack.c.h.b16 %v64
    %v954 = vunpack.c.l.b16 %v65
    %v955 = vunpack.c.h.b16 %v65
    %v956 = vunpack.c.l.b16 %v66
    %v957 = vunpack.c.h.b16 %v66
    %v958 = vunpack.c.l.b16 %v67
    %v959 = vunpack.c.h.b16 %v67
    %v960 = vunpack.c.l.b16 %v68
    %v961 = vunpack.c.h.b16 %v68
    %v962 = vunpack.c.l.b16 %v69
    %v963 = vunpack.c.h.b16 %v69
    %v964 = vunpack.c.l.b16 %v70
    %v965 = vunpack.c.h.b16 %v70
    %v966 = vunpack.c.l.b16 %v71
    %v967 = vunpack.c.h.b16 %v71
    %v968 = vunpack.c.l.b16 %v72
    %v969 = vunpack.c.h.b16 %v72
    %v970 = vunpack.c.l.b16 %v73
    %v971 = vunpack.c.h.b16 %v73
    %v972 = vunpack.c.l.b16 %v74
    %v973 = vunpack.c.h.b16 %v74
    %v974 = vunpack.c.l.b16 %v75
    %v975 = vunpack.c.h.b16 %v75
    %v976 = vunpack.c.l.b16 %v76
    %v977 = vunpack.c.h.b16 %v76
    %v978 = vunpack.c.l.b16 %v77
    %v979 = vunpack.c.h.b16 %v77
    %v980 = vunpack.c.l.b16 %v78
    %v981 = vunpack.c.h.b16 %v78
    %v982 = vunpack.c.l.b16 %v79
    %v983 = vunpack.c.h.b16 %v79
    %v984 = vunpack.c.l.b16 %v80
    %v985 = vunpack.c.h.b16 %v80
    %v986 = vunpack.c.l.b16 %v81
    %v987 = vunpack.c.h.b16 %v81
    %v988 = vunpack.c.l.b16 %v82
    %v989 = vunpack.c.h.b16 %v82
    %v990 = vunpack.c.l.b16 %v83
    %v991 = vunpack.c.h.b16 %v83
    %v992 = vunpack.c.l.b16 %v84
    %v993 = vunpack.c.h.b16 %v84
    %v994 = vunpack.c.l.b16 %v85
    %v995 = vunpack.c.h.b16 %v85
    %v996 = vunpack.c.l.b16 %v86
    %v997 = vunpack.c.h.b16 %v86
    %v998 = vunpack.c.l.b16 %v87
    %v999 = vunpack.c.h.b16 %v87
    %v1000 = vunpack.c.l.b16 %v88
    %v1001 = vunpack.c.h.b16 %v88
    %v1002 = vunpack.c.l.b16 %v89
    %v1003 = vunpack.c.h.b16 %v89
    %v1004 = vunpack.c.l.b16 %v90
    %v1005 = vunpack.c.h.b16 %v90
    %v1006 = vunpack.c.l.b16 %v91
    %v1007 = vunpack.c.h.b16 %v91
    %v1008 = vunpack.c.l.b16 %v92
    %v1009 = vunpack.c.h.b16 %v92
    %v1010 = vunpack.c.l.b16 %v93
    %v1011 = vunpack.c.h.b16 %v93
    %v1012 = vunpack.c.l.b16 %v94
    %v1013 = vunpack.c.h.b16 %v94
    %v1014 = vunpack.c.l.b16 %v95
    %v1015 = vunpack.c.h.b16 %v95
    %v1016 = vunpack.c.l.b16 %v96
    %v1017 = vunpack.c.h.b16 %v96
    %v1018 = vunpack.c.l.b16 %v97
    %v1019 = vunpack.c.h.b16 %v97
    %v1020 = vunpack.c.l.b16 %v98
    %v1021 = vunpack.c.h.b16 %v98
    %v1022 = vunpack.c.l.b16 %v99
    %v1023 = vunpack.c.h.b16 %v99
    %v1024 = vunpack.c.l.b16 %v100
    %v1025 = vunpack.c.h.b16 %v100
    %v1026 = vunpack.c.l.b16 %v101
    %v1027 = vunpack.c.h.b16 %v101
    %v1028 = vunpack.c.l.b16 %v102
    %v1029 = vunpack.c.h.b16 %v102
    %v1030 = vunpack.c.l.b16 %v103
    %v1031 = vunpack.c.h.b16 %v103
    %v1032 = vunpack.c.l.b16 %v104
    %v1033 = vunpack.c.h.b16 %v104
    %v1034 = vunpack.c.l.b16 %v105
    %v1035 = vunpack.c.h.b16 %v105
    %v1036 = vunpack.c.l.b16 %v106
    %v1037 = vunpack.c.h.b16 %v106
    %v1038 = vunpack.c.l.b16 %v107
    %v1039 = vunpack.c.h.b16 %v107
    %v1040 = vunpack.c.l.b16 %v108
    %v1041 = vunpack.c.h.b16 %v108
    %v1042 = vunpack.c.l.b16 %v109
    %v1043 = vunpack.c.h.b16 %v109
    %v1044 = vunpack.c.l.b16 %v110
    %v1045 = vunpack.c.h.b16 %v110
    %v1046 = vunpack.c.l.b16 %v111
    %v1047 = vunpack.c.h.b16 %v111
    %v1048 = vunpack.c.l.b16 %v112
    %v1049 = vunpack.c.h.b16 %v112
    %v1050 = vunpack.c.l.b16 %v113
    %v1051 = vunpack.c.h.b16 %v113
    %v1052 = vunpack.c.l.b16 %v114
    %v1053 = vunpack.c.h.b16 %v114
    %v1054 = vunpack.c.l.b16 %v115
    %v1055 = vunpack.c.h.b16 %v115
    %v1056 = vunpack.c.l.b16 %v116
    %v1057 = vunpack.c.h.b16 %v116
    %v1058 = vunpack.c.l.b16 %v117
    %v1059 = vunpack.c.h.b16 %v117
    %v1060 = vunpack.c.l.b16 %v118
    %v1061 = vunpack.c.h.b16 %v118
    %v1062 = vunpack.c.l.b16 %v119
    %v1063 = vunpack.c.h.b16 %v119
    %v1064 = vunpack.c.l.b16 %v120
    %v1065 = vunpack.c.h.b16 %v120
    %v1066 = vunpack.c.l.b16 %v121
    %v1067 = vunpack.c.h.b16 %v121
    %v1068 = vunpack.c.l.b16 %v122
    %v1069 = vunpack.c.h.b16 %v122
    %v1070 = vunpack.c.l.b16 %v123
    %v1071 = vunpack.c.h.b16 %v123
    %v1072 = vunpack.c.l.b16 %v124
    %v1073 = vunpack.c.h.b16 %v124
    %v1074 = vunpack.c.l.b16 %v125
    %v1075 = vunpack.c.h.b16 %v125
    %v1076 = vunpack.c.l.b16 %v126
    %v1077 = vunpack.c.h.b16 %v126
    %v1078 = vunpack.c.l.b16 %v127
    %v1079 = vunpack.c.h.b16 %v127
    %v1080 = vunpack.c.l.b16 %v128
    %v1081 = vunpack.c.h.b16 %v128
    %v1082 = vunpack.c.l.b16 %v129
    %v1083 = vunpack.c.h.b16 %v129
    %v1084 = vunpack.c.l.b16 %v130
    %v1085 = vunpack.c.h.b16 %v130
    %v1086 = vunpack.c.l.b16 %v131
    %v1087 = vunpack.c.h.b16 %v131
    %v1088 = vunpack.c.l.b16 %v132
    %v1089 = vunpack.c.h.b16 %v132
    %v1090 = vunpack.c.l.b16 %v133
    %v1091 = vunpack.c.h.b16 %v133
    %v1092 = vunpack.c.l.b16 %v134
    %v1093 = vunpack.c.h.b16 %v134
    %v1094 = vunpack.c.l.b16 %v135
    %v1095 = vunpack.c.h.b16 %v135
    %v1096 = vunpack.c.l.b16 %v136
    %v1097 = vunpack.c.h.b16 %v136
    %v1098 = vunpack.c.l.b16 %v137
    %v1099 = vunpack.c.h.b16 %v137
    %v1100 = vunpack.c.l.b16 %v138
    %v1101 = vunpack.c.h.b16 %v138
    %v1102 = vunpack.c.l.b16 %v139
    %v1103 = vunpack.c.h.b16 %v139
    %v1104 = vunpack.c.l.b16 %v140
    %v1105 = vunpack.c.h.b16 %v140
    %v1106 = vunpack.c.l.b16 %v141
    %v1107 = vunpack.c.h.b16 %v141
    %v1108 = vunpack.c.l.b16 %v142
    %v1109 = vunpack.c.h.b16 %v142
    %v1110 = vunpack.c.l.b16 %v143
    %v1111 = vunpack.c.h.b16 %v143
    %v1112 = vunpack.c.l.b16 %v144
    %v1113 = vunpack.c.h.b16 %v144
    %v1114 = vunpack.c.l.b16 %v145
    %v1115 = vunpack.c.h.b16 %v145
    %v1116 = vunpack.c.l.b16 %v146
    %v1117 = vunpack.c.h.b16 %v146
    %v1118 = vunpack.c.l.b16 %v147
    %v1119 = vunpack.c.h.b16 %v147
    %v1120 = vunpack.c.l.b16 %v148
    %v1121 = vunpack.c.h.b16 %v148
    %v1122 = vunpack.c.l.b16 %v149
    %v1123 = vunpack.c.h.b16 %v149
    %v1124 = vunpack.c.l.b16 %v150
    %v1125 = vunpack.c.h.b16 %v150
    %v1126 = vunpack.c.l.b16 %v151
    %v1127 = vunpack.c.h.b16 %v151
    %v1128 = vunpack.c.l.b16 %v152
    %v1129 = vunpack.c.h.b16 %v152
    %v1130 = vunpack.c.l.b16 %v153
    %v1131 = vunpack.c.h.b16 %v153
    %v1132 = vunpack.c.l.b16 %v154
    %v1133 = vunpack.c.h.b16 %v154
    %v1134 = vunpack.c.l.b16 %v155
    %v1135 = vunpack.c.h.b16 %v155
    %v1136 = vunpack.c.l.b16 %v156
    %v1137 = vunpack.c.h.b16 %v156
    %v1138 = vunpack.c.l.b16 %v157
    %v1139 = vunpack.c.h.b16 %v157
    %v1140 = vunpack.c.l.b16 %v158
    %v1141 = vunpack.c.h.b16 %v158
    %v1142 = vunpack.c.l.b16 %v159
    %v1143 = vunpack.c.h.b16 %v159
    %v1144 = vunpack.c.l.b16 %v160
    %v1145 = vunpack.c.h.b16 %v160
    %v1146 = vunpack.c.l.b16 %v161
    %v1147 = vunpack.c.h.b16 %v161
    %v1148 = vunpack.c.l.b16 %v162
    %v1149 = vunpack.c.h.b16 %v162
    %v1150 = vunpack.c.l.b16 %v163
    %v1151 = vunpack.c.h.b16 %v163
    %v1152 = vunpack.c.l.b16 %v164
    %v1153 = vunpack.c.h.b16 %v164
    %v1154 = vunpack.c.l.b16 %v165
    %v1155 = vunpack.c.h.b16 %v165
    %v1156 = vunpack.c.l.b16 %v166
    %v1157 = vunpack.c.h.b16 %v166
    %v1158 = vunpack.c.l.b16 %v167
    %v1159 = vunpack.c.h.b16 %v167
    %v1160 = vunpack.c.l.b16 %v168
    %v1161 = vunpack.c.h.b16 %v168
    %v1162 = vunpack.c.l.b16 %v169
    %v1163 = vunpack.c.h.b16 %v169
    %v1164 = vunpack.c.l.b16 %v170
    %v1165 = vunpack.c.h.b16 %v170
    %v1166 = vunpack.c.l.b16 %v171
    %v1167 = vunpack.c.h.b16 %v171
    %v1168 = vunpack.c.l.b16 %v172
    %v1169 = vunpack.c.h.b16 %v172
    %v1170 = vunpack.c.l.b16 %v173
    %v1171 = vunpack.c.h.b16 %v173
    %v1172 = vunpack.c.l.b16 %v174
    %v1173 = vunpack.c.h.b16 %v174
    %v1174 = vunpack.c.l.b16 %v175
    %v1175 = vunpack.c.h.b16 %v175
    %v1176 = vunpack.c.l.b16 %v176
    %v1177 = vunpack.c.h.b16 %v176
    %v1178 = vunpack.c.l.b16 %v177
    %v1179 = vunpack.c.h.b16 %v177
    %v1180 = vunpack.c.l.b16 %v178
    %v1181 = vunpack.c.h.b16 %v178
    %v1182 = vunpack.c.l.b16 %v179
    %v1183 = vunpack.c.h.b16 %v179
    %v1184 = vunpack.c.l.b16 %v180
    %v1185 = vunpack.c.h.b16 %v180
    %v1186 = vunpack.c.l.b16 %v181
    %v1187 = vunpack.c.h.b16 %v181
    %v1188 = vunpack.c.l.b16 %v182
    %v1189 = vunpack.c.h.b16 %v182
    %v1190 = vunpack.c.l.b16 %v183
    %v1191 = vunpack.c.h.b16 %v183
    %v1192 = vunpack.c.l.b16 %v184
    %v1193 = vunpack.c.h.b16 %v184
    %v1194 = vunpack.c.l.b16 %v185
    %v1195 = vunpack.c.h.b16 %v185
    %v1196 = vunpack.c.l.b16 %v186
    %v1197 = vunpack.c.h.b16 %v186
    %v1198 = vunpack.c.l.b16 %v187
    %v1199 = vunpack.c.h.b16 %v187
    %v1200 = vunpack.c.l.b16 %v188
    %v1201 = vunpack.c.h.b16 %v188
    %v1202 = vunpack.c.l.b16 %v189
    %v1203 = vunpack.c.h.b16 %v189
    %v1204 = vunpack.c.l.b16 %v190
    %v1205 = vunpack.c.h.b16 %v190
    %v1206 = vunpack.c.l.b16 %v191
    %v1207 = vunpack.c.h.b16 %v191
    %v1208 = vunpack.c.l.b16 %v192
    %v1209 = vunpack.c.h.b16 %v192
    %v1210 = vunpack.c.l.b16 %v193
    %v1211 = vunpack.c.h.b16 %v193
    %v1212 = vunpack.c.l.b16 %v194
    %v1213 = vunpack.c.h.b16 %v194
    %v1214 = vunpack.c.l.b16 %v195
    %v1215 = vunpack.c.h.b16 %v195
    %v1216 = vunpack.c.l.b16 %v196
    %v1217 = vunpack.c.h.b16 %v196
    %v1218 = vunpack.c.l.b16 %v197
    %v1219 = vunpack.c.h.b16 %v197
    %v1220 = vunpack.c.l.b16 %v198
    %v1221 = vunpack.c.h.b16 %v198
    %v1222 = vunpack.c.l.b16 %v199
    %v1223 = vunpack.c.h.b16 %v199
    %v1224 = vunpack.c.l.b16 %v200
    %v1225 = vunpack.c.h.b16 %v200
    %v1226 = vunpack.c.l.b16 %v201
    %v1227 = vunpack.c.h.b16 %v201
    %v1228 = vunpack.c.l.b16 %v202
    %v1229 = vunpack.c.h.b16 %v202
    %v1230 = vunpack.c.l.b16 %v203
    %v1231 = vunpack.c.h.b16 %v203
    %v1232 = vunpack.c.l.b16 %v204
    %v1233 = vunpack.c.h.b16 %v204
    %v1234 = vunpack.c.l.b16 %v205
    %v1235 = vunpack.c.h.b16 %v205
    %v1236 = vunpack.c.l.b16 %v206
    %v1237 = vunpack.c.h.b16 %v206
    %v1238 = vunpack.c.l.b16 %v207
    %v1239 = vunpack.c.h.b16 %v207
    %v1240 = vunpack.c.l.b16 %v208
    %v1241 = vunpack.c.h.b16 %v208
    %v1242 = vunpack.c.l.b16 %v209
    %v1243 = vunpack.c.h.b16 %v209
    %v1244 = vunpack.c.l.b16 %v210
    %v1245 = vunpack.c.h.b16 %v210
    %v1246 = vunpack.c.l.b16 %v211
    %v1247 = vunpack.c.h.b16 %v211
    %v1248 = vunpack.c.l.b16 %v212
    %v1249 = vunpack.c.h.b16 %v212
    %v1250 = vunpack.c.l.b16 %v213
    %v1251 = vunpack.c.h.b16 %v213
    %v1252 = vunpack.c.l.b16 %v214
    %v1253 = vunpack.c.h.b16 %v214
    %v1254 = vunpack.c.l.b16 %v215
    %v1255 = vunpack.c.h.b16 %v215
    %v1256 = vunpack.c.l.b16 %v216
    %v1257 = vunpack.c.h.b16 %v216
    %v1258 = vunpack.c.l.b16 %v217
    %v1259 = vunpack.c.h.b16 %v217
    %v1260 = vunpack.c.l.b16 %v218
    %v1261 = vunpack.c.h.b16 %v218
    %v1262 = vunpack.c.l.b16 %v219
    %v1263 = vunpack.c.h.b16 %v219
    %v1264 = vunpack.c.l.b16 %v220
    %v1265 = vunpack.c.h.b16 %v220
    %v1266 = vunpack.c.l.b16 %v221
    %v1267 = vunpack.c.h.b16 %v221
    %v1268 = vunpack.c.l.b16 %v222
    %v1269 = vunpack.c.h.b16 %v222
    %v1270 = vunpack.c.l.b16 %v223
    %v1271 = vunpack.c.h.b16 %v223
    %v1272 = vunpack.c.l.b16 %v224
    %v1273 = vunpack.c.h.b16 %v224
    %v1274 = vunpack.c.l.b16 %v225
    %v1275 = vunpack.c.h.b16 %v225
    %v1276 = vunpack.c.l.b16 %v226
    %v1277 = vunpack.c.h.b16 %v226
    %v1278 = vunpack.c.l.b16 %v227
    %v1279 = vunpack.c.h.b16 %v227
    %v1280 = vunpack.c.l.b16 %v228
    %v1281 = vunpack.c.h.b16 %v228
    %v1282 = vunpack.c.l.b16 %v229
    %v1283 = vunpack.c.h.b16 %v229
    %v1284 = vunpack.c.l.b16 %v230
    %v1285 = vunpack.c.h.b16 %v230
    %v1286 = vunpack.c.l.b16 %v231
    %v1287 = vunpack.c.h.b16 %v231
    %v1288 = vunpack.c.l.b16 %v232
    %v1289 = vunpack.c.h.b16 %v232
    %v1290 = vunpack.c.l.b16 %v233
    %v1291 = vunpack.c.h.b16 %v233
    %v1292 = vunpack.c.l.b16 %v234
    %v1293 = vunpack.c.h.b16 %v234
    %v1294 = vunpack.c.l.b16 %v235
    %v1295 = vunpack.c.h.b16 %v235
    %v1296 = vunpack.c.l.b16 %v236
    %v1297 = vunpack.c.h.b16 %v236
    %v1298 = vunpack.c.l.b16 %v237
    %v1299 = vunpack.c.h.b16 %v237
    %v1300 = vunpack.c.l.b16 %v238
    %v1301 = vunpack.c.h.b16 %v238
    %v1302 = vunpack.c.l.b16 %v239
    %v1303 = vunpack.c.h.b16 %v239
    %v1304 = vunpack.c.l.b16 %v240
    %v1305 = vunpack.c.h.b16 %v240
    %v1306 = vunpack.c.l.b16 %v241
    %v1307 = vunpack.c.h.b16 %v241
    %v1308 = vunpack.c.l.b16 %v242
    %v1309 = vunpack.c.h.b16 %v242
    %v1310 = vunpack.c.l.b16 %v243
    %v1311 = vunpack.c.h.b16 %v243
    %v1312 = vunpack.c.l.b16 %v244
    %v1313 = vunpack.c.h.b16 %v244
    %v1314 = vunpack.c.l.b16 %v245
    %v1315 = vunpack.c.h.b16 %v245
    %v1316 = vunpack.c.l.b16 %v246
    %v1317 = vunpack.c.h.b16 %v246
    %v1318 = vunpack.c.l.b16 %v247
    %v1319 = vunpack.c.h.b16 %v247
    %v1320 = vunpack.c.l.b16 %v248
    %v1321 = vunpack.c.h.b16 %v248
    %v1322 = vunpack.c.l.b16 %v249
    %v1323 = vunpack.c.h.b16 %v249
    %v1324 = vunpack.c.l.b16 %v250
    %v1325 = vunpack.c.h.b16 %v250
    %v1326 = vunpack.c.l.b16 %v251
    %v1327 = vunpack.c.h.b16 %v251
    %v1328 = vunpack.c.l.b16 %v252
    %v1329 = vunpack.c.h.b16 %v252
    %v1330 = vunpack.c.l.b16 %v253
    %v1331 = vunpack.c.h.b16 %v253
    %v1332 = vunpack.c.l.b16 %v254
    %v1333 = vunpack.c.h.b16 %v254
    %v1334 = vunpack.c.l.b16 %v255
    %v1335 = vunpack.c.h.b16 %v255
    %v1336 = vunpack.c.l.b16 %v256
    %v1337 = vunpack.c.h.b16 %v256
    %v1338 = vunpack.c.l.b16 %v257
    %v1339 = vunpack.c.h.b16 %v257
    %v1340 = vunpack.c.l.b16 %v258
    %v1341 = vunpack.c.h.b16 %v258
    %v1342 = vunpack.c.l.b16 %v259
    %v1343 = vunpack.c.h.b16 %v259
    %v1344 = vunpack.c.l.b16 %v260
    %v1345 = vunpack.c.h.b16 %v260
    %v1346 = vunpack.c.l.b16 %v261
    %v1347 = vunpack.c.h.b16 %v261
    %v1348 = vunpack.c.l.b16 %v262
    %v1349 = vunpack.c.h.b16 %v262
    %v1350 = vunpack.c.l.b16 %v263
    %v1351 = vunpack.c.h.b16 %v263
    %v1352 = vunpack.c.l.b16 %v264
    %v1353 = vunpack.c.h.b16 %v264
    %v1354 = vunpack.c.l.b16 %v265
    %v1355 = vunpack.c.h.b16 %v265
    %v1356 = vunpack.c.l.b16 %v266
    %v1357 = vunpack.c.h.b16 %v266
    %v1358 = vunpack.c.l.b16 %v267
    %v1359 = vunpack.c.h.b16 %v267
    %v1360 = vunpack.c.l.b16 %v268
    %v1361 = vunpack.c.h.b16 %v268
    %v1362 = vunpack.c.l.b16 %v269
    %v1363 = vunpack.c.h.b16 %v269
    %v1364 = vunpack.c.l.b16 %v270
    %v1365 = vunpack.c.h.b16 %v270
    %v1366 = vunpack.c.l.b16 %v271
    %v1367 = vunpack.c.h.b16 %v271
    %v1368 = vunpack.c.l.b16 %v272
    %v1369 = vunpack.c.h.b16 %v272
    %v1370 = vunpack.c.l.b16 %v273
    %v1371 = vunpack.c.h.b16 %v273
    %v1372 = vunpack.c.l.b16 %v274
    %v1373 = vunpack.c.h.b16 %v274
    %v1374 = vunpack.c.l.b16 %v275
    %v1375 = vunpack.c.h.b16 %v275
    %v1376 = vunpack.c.l.b16 %v276
    %v1377 = vunpack.c.h.b16 %v276
    %v1378 = vunpack.c.l.b16 %v277
    %v1379 = vunpack.c.h.b16 %v277
    %v1380 = vunpack.c.l.b16 %v278
    %v1381 = vunpack.c.h.b16 %v278
    %v1382 = vunpack.c.l.b16 %v279
    %v1383 = vunpack.c.h.b16 %v279
    %v1384 = vunpack.c.l.b16 %v280
    %v1385 = vunpack.c.h.b16 %v280
    %v1386 = vunpack.c.l.b16 %v281
    %v1387 = vunpack.c.h.b16 %v281
    %v1388 = vunpack.c.l.b16 %v282
    %v1389 = vunpack.c.h.b16 %v282
    %v1390 = vunpack.c.l.b16 %v283
    %v1391 = vunpack.c.h.b16 %v283
    %v1392 = vunpack.c.l.b16 %v284
    %v1393 = vunpack.c.h.b16 %v284
    %v1394 = vunpack.c.l.b16 %v285
    %v1395 = vunpack.c.h.b16 %v285
    %v1396 = vunpack.c.l.b16 %v286
    %v1397 = vunpack.c.h.b16 %v286
    %v1398 = vunpack.c.l.b16 %v287
    %v1399 = vunpack.c.h.b16 %v287
    %v1400 = vunpack.c.l.b16 %v288
    %v1401 = vunpack.c.h.b16 %v288
    %v1402 = vunpack.c.l.b16 %v289
    %v1403 = vunpack.c.h.b16 %v289
    %v1404 = vunpack.c.l.b16 %v290
    %v1405 = vunpack.c.h.b16 %v290
    %v1406 = vunpack.c.l.b16 %v291
    %v1407 = vunpack.c.h.b16 %v291
    %v1408 = vunpack.c.l.b16 %v292
    %v1409 = vunpack.c.h.b16 %v292
    %v1410 = vunpack.c.l.b16 %v293
    %v1411 = vunpack.c.h.b16 %v293
    %v1412 = vunpack.c.l.b16 %v294
    %v1413 = vunpack.c.h.b16 %v294
    %v1414 = vunpack.c.l.b16 %v295
    %v1415 = vunpack.c.h.b16 %v295
    %v1416 = vunpack.c.l.b16 %v296
    %v1417 = vunpack.c.h.b16 %v296
    %v1418 = vunpack.c.l.b16 %v297
    %v1419 = vunpack.c.h.b16 %v297
    %v1420 = vunpack.c.l.b16 %v298
    %v1421 = vunpack.c.h.b16 %v298
    %v1422 = vunpack.c.l.b16 %v299
    %v1423 = vunpack.c.h.b16 %v299
    %v1424 = vunpack.c.l.b16 %v300
    %v1425 = vunpack.c.h.b16 %v300
    %v1426 = vunpack.c.l.b16 %v301
    %v1427 = vunpack.c.h.b16 %v301
    %v1428 = vunpack.c.l.b16 %v302
    %v1429 = vunpack.c.h.b16 %v302
    %v1430 = vunpack.c.l.b16 %v303
    %v1431 = vunpack.c.h.b16 %v303
    %v1432 = vunpack.c.l.b16 %v304
    %v1433 = vunpack.c.h.b16 %v304
    %v1434 = vunpack.c.l.b16 %v305
    %v1435 = vunpack.c.h.b16 %v305
    %v1436 = vunpack.c.l.b16 %v306
    %v1437 = vunpack.c.h.b16 %v306
    %v1438 = vunpack.c.l.b16 %v307
    %v1439 = vunpack.c.h.b16 %v307
    %v1440 = vunpack.c.l.b16 %v308
    %v1441 = vunpack.c.h.b16 %v308
    %v1442 = vunpack.c.l.b16 %v309
    %v1443 = vunpack.c.h.b16 %v309
    %v1444 = vunpack.c.l.b16 %v310
    %v1445 = vunpack.c.h.b16 %v310
    %v1446 = vunpack.c.l.b16 %v311
    %v1447 = vunpack.c.h.b16 %v311
    %v1448 = vunpack.c.l.b16 %v312
    %v1449 = vunpack.c.h.b16 %v312
    %v1450 = vunpack.c.l.b16 %v313
    %v1451 = vunpack.c.h.b16 %v313
    %v1452 = vunpack.c.l.b16 %v314
    %v1453 = vunpack.c.h.b16 %v314
    %v1454 = vunpack.c.l.b16 %v315
    %v1455 = vunpack.c.h.b16 %v315
    %v1456 = vunpack.c.l.b16 %v316
    %v1457 = vunpack.c.h.b16 %v316
    %v1458 = vunpack.c.l.b16 %v317
    %v1459 = vunpack.c.h.b16 %v317
    %v1460 = vunpack.c.l.b16 %v318
    %v1461 = vunpack.c.h.b16 %v318
    %v1462 = vunpack.c.l.b16 %v319
    %v1463 = vunpack.c.h.b16 %v319
    %v1464 = vunpack.c.l.b16 %v320
    %v1465 = vunpack.c.h.b16 %v320
    %v1466 = vunpack.c.l.b16 %v321
    %v1467 = vunpack.c.h.b16 %v321
    %v1468 = vunpack.c.l.b16 %v322
    %v1469 = vunpack.c.h.b16 %v322
    %v1470 = vunpack.c.l.b16 %v323
    %v1471 = vunpack.c.h.b16 %v323
    %v1472 = vunpack.c.l.b16 %v324
    %v1473 = vunpack.c.h.b16 %v324
    %v1474 = vunpack.c.l.b16 %v325
    %v1475 = vunpack.c.h.b16 %v325
    %v1476 = vunpack.c.l.b16 %v326
    %v1477 = vunpack.c.h.b16 %v326
    %v1478 = vunpack.c.l.b16 %v327
    %v1479 = vunpack.c.h.b16 %v327
    %v1480 = vunpack.c.l.b16 %v328
    %v1481 = vunpack.c.h.b16 %v328
    %v1482 = vunpack.c.l.b16 %v329
    %v1483 = vunpack.c.h.b16 %v329
    %v1484 = vunpack.c.l.b16 %v330
    %v1485 = vunpack.c.h.b16 %v330
    %v1486 = vunpack.c.l.b16 %v331
    %v1487 = vunpack.c.h.b16 %v331
    %v1488 = vunpack.c.l.b16 %v332
    %v1489 = vunpack.c.h.b16 %v332
    %v1490 = vunpack.c.l.b16 %v333
    %v1491 = vunpack.c.h.b16 %v333
    %v1492 = vunpack.c.l.b16 %v334
    %v1493 = vunpack.c.h.b16 %v334
    %v1494 = vunpack.c.l.b16 %v335
    %v1495 = vunpack.c.h.b16 %v335
    %v1496 = vunpack.c.l.b16 %v336
    %v1497 = vunpack.c.h.b16 %v336
    %v1498 = vunpack.c.l.b16 %v337
    %v1499 = vunpack.c.h.b16 %v337
    %v1500 = vunpack.c.l.b16 %v338
    %v1501 = vunpack.c.h.b16 %v338
    %v1502 = vunpack.c.l.b16 %v339
    %v1503 = vunpack.c.h.b16 %v339
    %v1504 = vunpack.c.l.b16 %v340
    %v1505 = vunpack.c.h.b16 %v340
    %v1506 = vunpack.c.l.b16 %v341
    %v1507 = vunpack.c.h.b16 %v341
    %v1508 = vunpack.c.l.b16 %v342
    %v1509 = vunpack.c.h.b16 %v342
    %v1510 = vunpack.c.l.b16 %v343
    %v1511 = vunpack.c.h.b16 %v343
    %v1512 = vunpack.c.l.b16 %v344
    %v1513 = vunpack.c.h.b16 %v344
    %v1514 = vunpack.c.l.b16 %v345
    %v1515 = vunpack.c.h.b16 %v345
    %v1516 = vunpack.c.l.b16 %v346
    %v1517 = vunpack.c.h.b16 %v346
    %v1518 = vunpack.c.l.b16 %v347
    %v1519 = vunpack.c.h.b16 %v347
    %v1520 = vunpack.c.l.b16 %v348
    %v1521 = vunpack.c.h.b16 %v348
    %v1522 = vunpack.c.l.b16 %v349
    %v1523 = vunpack.c.h.b16 %v349
    %v1524 = vunpack.c.l.b16 %v350
    %v1525 = vunpack.c.h.b16 %v350
    %v1526 = vunpack.c.l.b16 %v351
    %v1527 = vunpack.c.h.b16 %v351
    %v1528 = vunpack.c.l.b16 %v352
    %v1529 = vunpack.c.h.b16 %v352
    %v1530 = vunpack.c.l.b16 %v353
    %v1531 = vunpack.c.h.b16 %v353
    %v1532 = vunpack.c.l.b16 %v354
    %v1533 = vunpack.c.h.b16 %v354
    %v1534 = vunpack.c.l.b16 %v355
    %v1535 = vunpack.c.h.b16 %v355
    %v1536 = vunpack.c.l.b16 %v356
    %v1537 = vunpack.c.h.b16 %v356
    %v1538 = vunpack.c.l.b16 %v357
    %v1539 = vunpack.c.h.b16 %v357
    %v1540 = vunpack.c.l.b16 %v358
    %v1541 = vunpack.c.h.b16 %v358
    %v1542 = vunpack.c.l.b16 %v359
    %v1543 = vunpack.c.h.b16 %v359
    %v1544 = vunpack.c.l.b16 %v360
    %v1545 = vunpack.c.h.b16 %v360
    %v1546 = vunpack.c.l.b16 %v361
    %v1547 = vunpack.c.h.b16 %v361
    %v1548 = vunpack.c.l.b16 %v362
    %v1549 = vunpack.c.h.b16 %v362
    %v1550 = vunpack.c.l.b16 %v363
    %v1551 = vunpack.c.h.b16 %v363
    %v1552 = vunpack.c.l.b16 %v364
    %v1553 = vunpack.c.h.b16 %v364
    %v1554 = vunpack.c.l.b16 %v365
    %v1555 = vunpack.c.h.b16 %v365
    %v1556 = vunpack.c.l.b16 %v366
    %v1557 = vunpack.c.h.b16 %v366
    %v1558 = vunpack.c.l.b16 %v367
    %v1559 = vunpack.c.h.b16 %v367
    %v1560 = vunpack.c.l.b16 %v368
    %v1561 = vunpack.c.h.b16 %v368
    %v1562 = vunpack.c.l.b16 %v369
    %v1563 = vunpack.c.h.b16 %v369
    %v1564 = vunpack.c.l.b16 %v370
    %v1565 = vunpack.c.h.b16 %v370
    %v1566 = vunpack.c.l.b16 %v371
    %v1567 = vunpack.c.h.b16 %v371
    %v1568 = vunpack.c.l.b16 %v372
    %v1569 = vunpack.c.h.b16 %v372
    %v1570 = vunpack.c.l.b16 %v373
    %v1571 = vunpack.c.h.b16 %v373
    %v1572 = vunpack.c.l.b16 %v374
    %v1573 = vunpack.c.h.b16 %v374
    %v1574 = vunpack.c.l.b16 %v375
    %v1575 = vunpack.c.h.b16 %v375
    %v1576 = vunpack.c.l.b16 %v376
    %v1577 = vunpack.c.h.b16 %v376
    %v1578 = vunpack.c.l.b16 %v377
    %v1579 = vunpack.c.h.b16 %v377
    %v1580 = vunpack.c.l.b16 %v378
    %v1581 = vunpack.c.h.b16 %v378
    %v1582 = vunpack.c.l.b16 %v379
    %v1583 = vunpack.c.h.b16 %v379
    %v1584 = vunpack.c.l.b16 %v380
    %v1585 = vunpack.c.h.b16 %v380
    %v1586 = vunpack.c.l.b16 %v381
    %v1587 = vunpack.c.h.b16 %v381
    %v1588 = vunpack.c.l.b16 %v382
    %v1589 = vunpack.c.h.b16 %v382
    %v1590 = vunpack.c.l.b16 %v383
    %v1591 = vunpack.c.h.b16 %v383
    %v1592 = vunpack.c.l.b16 %v384
    %v1593 = vunpack.c.h.b16 %v384
    %v1594 = vunpack.c.l.b16 %v385
    %v1595 = vunpack.c.h.b16 %v385
    %v1596 = vunpack.c.l.b16 %v386
    %v1597 = vunpack.c.h.b16 %v386
    %v1598 = vunpack.c.l.b16 %v387
    %v1599 = vunpack.c.h.b16 %v387
    %v1600 = vunpack.c.l.b16 %v388
    %v1601 = vunpack.c.h.b16 %v388
    %v1602 = vunpack.c.l.b16 %v389
    %v1603 = vunpack.c.h.b16 %v389
    %v1604 = vunpack.c.l.b16 %v390
    %v1605 = vunpack.c.h.b16 %v390
    %v1606 = vunpack.c.l.b16 %v391
    %v1607 = vunpack.c.h.b16 %v391
    %v1608 = vunpack.c.l.b16 %v392
    %v1609 = vunpack.c.h.b16 %v392
    %v1610 = vunpack.c.l.b16 %v393
    %v1611 = vunpack.c.h.b16 %v393
    %v1612 = vunpack.c.l.b16 %v394
    %v1613 = vunpack.c.h.b16 %v394
    %v1614 = vunpack.c.l.b16 %v395
    %v1615 = vunpack.c.h.b16 %v395
    %v1616 = vunpack.c.l.b16 %v396
    %v1617 = vunpack.c.h.b16 %v396
    %v1618 = vunpack.c.l.b16 %v397
    %v1619 = vunpack.c.h.b16 %v397
    %v1620 = vunpack.c.l.b16 %v398
    %v1621 = vunpack.c.h.b16 %v398
    %v1622 = vunpack.c.l.b16 %v399
    %v1623 = vunpack.c.h.b16 %v399
    %v1624 = vunpack.c.l.b16 %v400
    %v1625 = vunpack.c.h.b16 %v400
    %v1626 = vunpack.c.l.b16 %v401
    %v1627 = vunpack.c.h.b16 %v401
    %v1628 = vunpack.c.l.b16 %v402
    %v1629 = vunpack.c.h.b16 %v402
    %v1630 = vunpack.c.l.b16 %v403
    %v1631 = vunpack.c.h.b16 %v403
    %v1632 = vunpack.c.l.b16 %v404
    %v1633 = vunpack.c.h.b16 %v404
    %v1634 = vunpack.c.l.b16 %v405
    %v1635 = vunpack.c.h.b16 %v405
    %v1636 = vunpack.c.l.b16 %v406
    %v1637 = vunpack.c.h.b16 %v406
    %v1638 = vunpack.c.l.b16 %v407
    %v1639 = vunpack.c.h.b16 %v407
    %v1640 = vunpack.c.l.b16 %v408
    %v1641 = vunpack.c.h.b16 %v408
    %v1642 = vunpack.c.l.b16 %v409
    %v1643 = vunpack.c.h.b16 %v409
    %v1644 = vunpack.c.l.b16 %v410
    %v1645 = vunpack.c.h.b16 %v410
    %v1646 = vunpack.c.l.b16 %v411
    %v1647 = vunpack.c.h.b16 %v411
    %v1648 = vunpack.c.l.b16 %v412
    %v1649 = vunpack.c.h.b16 %v412
    %v1650 = vunpack.c.l.b16 %v413
    %v1651 = vunpack.c.h.b16 %v413
    %v1652 = vunpack.c.l.b16 %v414
    %v1653 = vunpack.c.h.b16 %v414
    %v1654 = vunpack.c.l.b16 %v415
    %v1655 = vunpack.c.h.b16 %v415
    %v1656 = vunpack.c.l.b16 %v416
    %v1657 = vunpack.c.h.b16 %v416
    %v1658 = vunpack.c.l.b16 %v417
    %v1659 = vunpack.c.h.b16 %v417
    %v1660 = vpack.c.b16 %v884, %v876
    %v1661 = vpack.c.b16 %v885, %v877
    %v1662 = vpack.c.b16 %v886, %v878
    %v1663 = vpack.c.b16 %v887, %v879
    %v1664 = vpack.c.b16 %v888, %v880
    %v1665 = vpack.c.b16 %v889, %v881
    %v1666 = vpack.c.b16 %v890, %v882
    %v1667 = vpack.c.b16 %v891, %v883
    %v1668 = vpack.c.b16 %v900, %v892
    %v1669 = vpack.c.b16 %v901, %v893
    %v1670 = vpack.c.b16 %v902, %v894
    %v1671 = vpack.c.b16 %v903, %v895
    %v1672 = vpack.c.b16 %v904, %v896
    %v1673 = vpack.c.b16 %v905, %v897
    %v1674 = vpack.c.b16 %v906, %v898
    %v1675 = vpack.c.b16 %v907, %v899
    %v1676 = vpack.c.b16 %v916, %v908
    %v1677 = vpack.c.b16 %v917, %v909
    %v1678 = vpack.c.b16 %v918, %v910
    %v1679 = vpack.c.b16 %v919, %v911
    %v1680 = vpack.c.b16 %v920, %v912
    %v1681 = vpack.c.b16 %v921, %v913
    %v1682 = vpack.c.b16 %v922, %v914
    %v1683 = vpack.c.b16 %v923, %v915
    %v1684 = vpack.c.b16 %v932, %v924
    %v1685 = vpack.c.b16 %v933, %v925
    %v1686 = vpack.c.b16 %v934, %v926
    %v1687 = vpack.c.b16 %v935, %v927
    %v1688 = vpack.c.b16 %v936, %v928
    %v1689 = vpack.c.b16 %v937, %v929
    %v1690 = vpack.c.b16 %v938, %v930
    %v1691 = vpack.c.b16 %v939, %v931
    %v1692 = vpack.c.b16 %v948, %v940
    %v1693 = vpack.c.b16 %v949, %v941
    %v1694 = vpack.c.b16 %v950, %v942
    %v1695 = vpack.c.b16 %v951, %v943
    %v1696 = vpack.c.b16 %v952, %v944
    %v1697 = vpack.c.b16 %v953, %v945
    %v1698 = vpack.c.b16 %v954, %v946
    %v1699 = vpack.c.b16 %v955, %v947
    %v1700 = vpack.c.b16 %v964, %v956
    %v1701 = vpack.c.b16 %v965, %v957
    %v1702 = vpack.c.b16 %v966, %v958
    %v1703 = vpack.c.b16 %v967, %v959
    %v1704 = vpack.c.b16 %v968, %v960
    %v1705 = vpack.c.b16 %v969, %v961
    %v1706 = vpack.c.b16 %v970, %v962
    %v1707 = vpack.c.b16 %v971, %v963
    %v1708 = vpack.c.b16 %v980, %v972
    %v1709 = vpack.c.b16 %v981, %v973
    %v1710 = vpack.c.b16 %v982, %v974
    %v1711 = vpack.c.b16 %v983, %v975
    %v1712 = vpack.c.b16 %v984, %v976
    %v1713 = vpack.c.b16 %v985, %v977
    %v1714 = vpack.c.b16 %v986, %v978
    %v1715 = vpack.c.b16 %v987, %v979
    %v1716 = vpack.c.b16 %v996, %v988
    %v1717 = vpack.c.b16 %v997, %v989
    %v1718 = vpack.c.b16 %v998, %v990
    %v1719 = vpack.c.b16 %v999, %v991
    %v1720 = vpack.c.b16 %v1000, %v992
    %v1721 = vpack.c.b16 %v1001, %v993
    %v1722 = vpack.c.b16 %v1002, %v994
    %v1723 = vpack.c.b16 %v1003, %v995
    %v1724 = vpack.c.b16 %v1012, %v1004
    %v1725 = vpack.c.b16 %v1013, %v1005
    %v1726 = vpack.c.b16 %v1014, %v1006
    %v1727 = vpack.c.b16 %v1015, %v1007
    %v1728 = vpack.c.b16 %v1016, %v1008
    %v1729 = vpack.c.b16 %v1017, %v1009
    %v1730 = vpack.c.b16 %v1018, %v1010
    %v1731 = vpack.c.b16 %v1019, %v1011
    %v1732 = vpack.c.b16 %v1028, %v1020
    %v1733 = vpack.c.b16 %v1029, %v1021
    %v1734 = vpack.c.b16 %v1030, %v1022
    %v1735 = vpack.c.b16 %v1031, %v1023
    %v1736 = vpack.c.b16 %v1032, %v1024
    %v1737 = vpack.c.b16 %v1033, %v1025
    %v1738 = vpack.c.b16 %v1034, %v1026
    %v1739 = vpack.c.b16 %v1035, %v1027
    %v1740 = vpack.c.b16 %v1044, %v1036
    %v1741 = vpack.c.b16 %v1045, %v1037
    %v1742 = vpack.c.b16 %v1046, %v1038
    %v1743 = vpack.c.b16 %v1047, %v1039
    %v1744 = vpack.c.b16 %v1048, %v1040
    %v1745 = vpack.c.b16 %v1049, %v1041
    %v1746 = vpack.c.b16 %v1050, %v1042
    %v1747 = vpack.c.b16 %v1051, %v1043
    %v1748 = vpack.c.b16 %v1060, %v1052
    %v1749 = vpack.c.b16 %v1061, %v1053
    %v1750 = vpack.c.b16 %v1062, %v1054
    %v1751 = vpack.c.b16 %v1063, %v1055
    %v1752 = vpack.c.b16 %v1064, %v1056
    %v1753 = vpack.c.b16 %v1065, %v1057
    %v1754 = vpack.c.b16 %v1066, %v1058
    %v1755 = vpack.c.b16 %v1067, %v1059
    %v1756 = vpack.c.b16 %v1076, %v1068
    %v1757 = vpack.c.b16 %v1077, %v1069
    %v1758 = vpack.c.b16 %v1078, %v1070
    %v1759 = vpack.c.b16 %v1079, %v1071
    %v1760 = vpack.c.b16 %v1080, %v1072
    %v1761 = vpack.c.b16 %v1081, %v1073
    %v1762 = vpack.c.b16 %v1082, %v1074
    %v1763 = vpack.c.b16 %v1083, %v1075
    %v1764 = vpack.c.b16 %v1092, %v1084
    %v1765 = vpack.c.b16 %v1093, %v1085
    %v1766 = vpack.c.b16 %v1094, %v1086
    %v1767 = vpack.c.b16 %v1095, %v1087
    %v1768 = vpack.c.b16 %v1096, %v1088
    %v1769 = vpack.c.b16 %v1097, %v1089
    %v1770 = vpack.c.b16 %v1098, %v1090
    %v1771 = vpack.c.b16 %v1099, %v1091
    %v1772 = vpack.c.b16 %v1108, %v1100
    %v1773 = vpack.c.b16 %v1109, %v1101
    %v1774 = vpack.c.b16 %v1110, %v1102
    %v1775 = vpack.c.b16 %v1111, %v1103
    %v1776 = vpack.c.b16 %v1112, %v1104
    %v1777 = vpack.c.b16 %v1113, %v1105
    %v1778 = vpack.c.b16 %v1114, %v1106
    %v1779 = vpack.c.b16 %v1115, %v1107
    %v1780 = vpack.c.b16 %v1124, %v1116
    %v1781 = vpack.c.b16 %v1125, %v1117
    %v1782 = vpack.c.b16 %v1126, %v1118
    %v1783 = vpack.c.b16 %v1127, %v1119
    %v1784 = vpack.c.b16 %v1128, %v1120
    %v1785 = vpack.c.b16 %v1129, %v1121
    %v1786 = vpack.c.b16 %v1130, %v1122
    %v1787 = vpack.c.b16 %v1131, %v1123
    %v1788 = vpack.c.b16 %v1140, %v1132
    %v1789 = vpack.c.b16 %v1141, %v1133
    %v1790 = vpack.c.b16 %v1142, %v1134
    %v1791 = vpack.c.b16 %v1143, %v1135
    %v1792 = vpack.c.b16 %v1144, %v1136
    %v1793 = vpack.c.b16 %v1145, %v1137
    %v1794 = vpack.c.b16 %v1146, %v1138
    %v1795 = vpack.c.b16 %v1147, %v1139
    %v1796 = vpack.c.b16 %v1156, %v1148
    %v1797 = vpack.c.b16 %v1157, %v1149
    %v1798 = vpack.c.b16 %v1158, %v1150
    %v1799 = vpack.c.b16 %v1159, %v1151
    %v1800 = vpack.c.b16 %v1160, %v1152
    %v1801 = vpack.c.b16 %v1161, %v1153
    %v1802 = vpack.c.b16 %v1162, %v1154
    %v1803 = vpack.c.b16 %v1163, %v1155
    %v1804 = vpack.c.b16 %v1172, %v1164
    %v1805 = vpack.c.b16 %v1173, %v1165
    %v1806 = vpack.c.b16 %v1174, %v1166
    %v1807 = vpack.c.b16 %v1175, %v1167
    %v1808 = vpack.c.b16 %v1176, %v1168
    %v1809 = vpack.c.b16 %v1177, %v1169
    %v1810 = vpack.c.b16 %v1178, %v1170
    %v1811 = vpack.c.b16 %v1179, %v1171
    %v1812 = vpack.c.b16 %v1188, %v1180
    %v1813 = vpack.c.b16 %v1189, %v1181
    %v1814 = vpack.c.b16 %v1190, %v1182
    %v1815 = vpack.c.b16 %v1191, %v1183
    %v1816 = vpack.c.b16 %v1192, %v1184
    %v1817 = vpack.c.b16 %v1193, %v1185
    %v1818 = vpack.c.b16 %v1194, %v1186
    %v1819 = vpack.c.b16 %v1195, %v1187
    %v1820 = vpack.c.b16 %v1204, %v1196
    %v1821 = vpack.c.b16 %v1205, %v1197
    %v1822 = vpack.c.b16 %v1206, %v1198
    %v1823 = vpack.c.b16 %v1207, %v1199
    %v1824 = vpack.c.b16 %v1208, %v1200
    %v1825 = vpack.c.b16 %v1209, %v1201
    %v1826 = vpack.c.b16 %v1210, %v1202
    %v1827 = vpack.c.b16 %v1211, %v1203
    %v1828 = vpack.c.b16 %v1220, %v1212
    %v1829 = vpack.c.b16 %v1221, %v1213
    %v1830 = vpack.c.b16 %v1222, %v1214
    %v1831 = vpack.c.b16 %v1223, %v1215
    %v1832 = vpack.c.b16 %v1224, %v1216
    %v1833 = vpack.c.b16 %v1225, %v1217
    %v1834 = vpack.c.b16 %v1226, %v1218
    %v1835 = vpack.c.b16 %v1227, %v1219
    %v1836 = vpack.c.b16 %v1236, %v1228
    %v1837 = vpack.c.b16 %v1237, %v1229
    %v1838 = vpack.c.b16 %v1238, %v1230
    %v1839 = vpack.c.b16 %v1239, %v1231
    %v1840 = vpack.c.b16 %v1240, %v1232
    %v1841 = vpack.c.b16 %v1241, %v1233
    %v1842 = vpack.c.b16 %v1242, %v1234
    %v1843 = vpack.c.b16 %v1243, %v1235
    %v1844 = vpack.c.b16 %v1252, %v1244
    %v1845 = vpack.c.b16 %v1253, %v1245
    %v1846 = vpack.c.b16 %v1254, %v1246
    %v1847 = vpack.c.b16 %v1255, %v1247
    %v1848 = vpack.c.b16 %v1256, %v1248
    %v1849 = vpack.c.b16 %v1257, %v1249
    %v1850 = vpack.c.b16 %v1258, %v1250
    %v1851 = vpack.c.b16 %v1259, %v1251
    %v1852 = vpack.c.b16 %v1268, %v1260
    %v1853 = vpack.c.b16 %v1269, %v1261
    %v1854 = vpack.c.b16 %v1270, %v1262
    %v1855 = vpack.c.b16 %v1271, %v1263
    %v1856 = vpack.c.b16 %v1272, %v1264
    %v1857 = vpack.c.b16 %v1273, %v1265
    %v1858 = vpack.c.b16 %v1274, %v1266
    %v1859 = vpack.c.b16 %v1275, %v1267
    %v1860 = vpack.c.b16 %v1284, %v1276
    %v1861 = vpack.c.b16 %v1285, %v1277
    %v1862 = vpack.c.b16 %v1286, %v1278
    %v1863 = vpack.c.b16 %v1287, %v1279
    %v1864 = vpack.c.b16 %v1288, %v1280
    %v1865 = vpack.c.b16 %v1289, %v1281
    %v1866 = vpack.c.b16 %v1290, %v1282
    %v1867 = vpack.c.b16 %v1291, %v1283
    %v1868 = vpack.c.b16 %v1300, %v1292
    %v1869 = vpack.c.b16 %v1301, %v1293
    %v1870 = vpack.c.b16 %v1302, %v1294
    %v1871 = vpack.c.b16 %v1303, %v1295
    %v1872 = vpack.c.b16 %v1304, %v1296
    %v1873 = vpack.c.b16 %v1305, %v1297
    %v1874 = vpack.c.b16 %v1306, %v1298
    %v1875 = vpack.c.b16 %v1307, %v1299
    %v1876 = vpack.c.b16 %v1316, %v1308
    %v1877 = vpack.c.b16 %v1317, %v1309
    %v1878 = vpack.c.b16 %v1318, %v1310
    %v1879 = vpack.c.b16 %v1319, %v1311
    %v1880 = vpack.c.b16 %v1320, %v1312
    %v1881 = vpack.c.b16 %v1321, %v1313
    %v1882 = vpack.c.b16 %v1322, %v1314
    %v1883 = vpack.c.b16 %v1323, %v1315
    %v1884 = vpack.c.b16 %v1332, %v1324
    %v1885 = vpack.c.b16 %v1333, %v1325
    %v1886 = vpack.c.b16 %v1334, %v1326
    %v1887 = vpack.c.b16 %v1335, %v1327
    %v1888 = vpack.c.b16 %v1336, %v1328
    %v1889 = vpack.c.b16 %v1337, %v1329
    %v1890 = vpack.c.b16 %v1338, %v1330
    %v1891 = vpack.c.b16 %v1339, %v1331
    %v1892 = vpack.c.b16 %v1348, %v1340
    %v1893 = vpack.c.b16 %v1349, %v1341
    %v1894 = vpack.c.b16 %v1350, %v1342
    %v1895 = vpack.c.b16 %v1351, %v1343
    %v1896 = vpack.c.b16 %v1352, %v1344
    %v1897 = vpack.c.b16 %v1353, %v1345
    %v1898 = vpack.c.b16 %v1354, %v1346
    %v1899 = vpack.c.b16 %v1355, %v1347
    %v1900 = vpack.c.b16 %v1364, %v1356
    %v1901 = vpack.c.b16 %v1365, %v1357
    %v1902 = vpack.c.b16 %v1366, %v1358
    %v1903 = vpack.c.b16 %v1367, %v1359
    %v1904 = vpack.c.b16 %v1368, %v1360
    %v1905 = vpack.c.b16 %v1369, %v1361
    %v1906 = vpack.c.b16 %v1370, %v1362
    %v1907 = vpack.c.b16 %v1371, %v1363
    %v1908 = vpack.c.b16 %v1380, %v1372
    %v1909 = vpack.c.b16 %v1381, %v1373
    %v1910 = vpack.c.b16 %v1382, %v1374
    %v1911 = vpack.c.b16 %v1383, %v1375
    %v1912 = vpack.c.b16 %v1384, %v1376
    %v1913 = vpack.c.b16 %v1385, %v1377
    %v1914 = vpack.c.b16 %v1386, %v1378
    %v1915 = vpack.c.b16 %v1387, %v1379
    %v1916 = vpack.c.b16 %v1396, %v1388
    %v1917 = vpack.c.b16 %v1397, %v1389
    %v1918 = vpack.c.b16 %v1398, %v1390
    %v1919 = vpack.c.b16 %v1399, %v1391
    %v1920 = vpack.c.b16 %v1400, %v1392
    %v1921 = vpack.c.b16 %v1401, %v1393
    %v1922 = vpack.c.b16 %v1402, %v1394
    %v1923 = vpack.c.b16 %v1403, %v1395
    %v1924 = vpack.c.b16 %v1412, %v1404
    %v1925 = vpack.c.b16 %v1413, %v1405
    %v1926 = vpack.c.b16 %v1414, %v1406
    %v1927 = vpack.c.b16 %v1415, %v1407
    %v1928 = vpack.c.b16 %v1416, %v1408
    %v1929 = vpack.c.b16 %v1417, %v1409
    %v1930 = vpack.c.b16 %v1418, %v1410
    %v1931 = vpack.c.b16 %v1419, %v1411
    %v1932 = vpack.c.b16 %v1428, %v1420
    %v1933 = vpack.c.b16 %v1429, %v1421
    %v1934 = vpack.c.b16 %v1430, %v1422
    %v1935 = vpack.c.b16 %v1431, %v1423
    %v1936 = vpack.c.b16 %v1432, %v1424
    %v1937 = vpack.c.b16 %v1433, %v1425
    %v1938 = vpack.c.b16 %v1434, %v1426
    %v1939 = vpack.c.b16 %v1435, %v1427
    %v1940 = vpack.c.b16 %v1444, %v1436
    %v1941 = vpack.c.b16 %v1445, %v1437
    %v1942 = vpack.c.b16 %v1446, %v1438
    %v1943 = vpack.c.b16 %v1447, %v1439
    %v1944 = vpack.c.b16 %v1448, %v1440
    %v1945 = vpack.c.b16 %v1449, %v1441
    %v1946 = vpack.c.b16 %v1450, %v1442
    %v1947 = vpack.c.b16 %v1451, %v1443
    %v1948 = vpack.c.b16 %v1460, %v1452
    %v1949 = vpack.c.b16 %v1461, %v1453
    %v1950 = vpack.c.b16 %v1462, %v1454
    %v1951 = vpack.c.b16 %v1463, %v1455
    %v1952 = vpack.c.b16 %v1464, %v1456
    %v1953 = vpack.c.b16 %v1465, %v1457
    %v1954 = vpack.c.b16 %v1466, %v1458
    %v1955 = vpack.c.b16 %v1467, %v1459
    %v1956 = vpack.c.b16 %v1476, %v1468
    %v1957 = vpack.c.b16 %v1477, %v1469
    %v1958 = vpack.c.b16 %v1478, %v1470
    %v1959 = vpack.c.b16 %v1479, %v1471
    %v1960 = vpack.c.b16 %v1480, %v1472
    %v1961 = vpack.c.b16 %v1481, %v1473
    %v1962 = vpack.c.b16 %v1482, %v1474
    %v1963 = vpack.c.b16 %v1483, %v1475
    %v1964 = vpack.c.b16 %v1492, %v1484
    %v1965 = vpack.c.b16 %v1493, %v1485
    %v1966 = vpack.c.b16 %v1494, %v1486
    %v1967 = vpack.c.b16 %v1495, %v1487
    %v1968 = vpack.c.b16 %v1496, %v1488
    %v1969 = vpack.c.b16 %v1497, %v1489
    %v1970 = vpack.c.b16 %v1498, %v1490
    %v1971 = vpack.c.b16 %v1499, %v1491
    %v1972 = vpack.c.b16 %v1508, %v1500
    %v1973 = vpack.c.b16 %v1509, %v1501
    %v1974 = vpack.c.b16 %v1510, %v1502
    %v1975 = vpack.c.b16 %v1511, %v1503
    %v1976 = vpack.c.b16 %v1512, %v1504
    %v1977 = vpack.c.b16 %v1513, %v1505
    %v1978 = vpack.c.b16 %v1514, %v1506
    %v1979 = vpack.c.b16 %v1515, %v1507
    %v1980 = vpack.c.b16 %v1524, %v1516
    %v1981 = vpack.c.b16 %v1525, %v1517
    %v1982 = vpack.c.b16 %v1526, %v1518
    %v1983 = vpack.c.b16 %v1527, %v1519
    %v1984 = vpack.c.b16 %v1528, %v1520
    %v1985 = vpack.c.b16 %v1529, %v1521
    %v1986 = vpack.c.b16 %v1530, %v1522
    %v1987 = vpack.c.b16 %v1531, %v1523
    %v1988 = vpack.c.b16 %v1540, %v1532
    %v1989 = vpack.c.b16 %v1541, %v1533
    %v1990 = vpack.c.b16 %v1542, %v1534
    %v1991 = vpack.c.b16 %v1543, %v1535
    %v1992 = vpack.c.b16 %v1544, %v1536
    %v1993 = vpack.c.b16 %v1545, %v1537
    %v1994 = vpack.c.b16 %v1546, %v1538
    %v1995 = vpack.c.b16 %v1547, %v1539
    %v1996 = vpack.c.b16 %v1556, %v1548
    %v1997 = vpack.c.b16 %v1557, %v1549
    %v1998 = vpack.c.b16 %v1558, %v1550
    %v1999 = vpack.c.b16 %v1559, %v1551
    %v2000 = vpack.c.b16 %v1560, %v1552
    %v2001 = vpack.c.b16 %v1561, %v1553
    %v2002 = vpack.c.b16 %v1562, %v1554
    %v2003 = vpack.c.b16 %v1563, %v1555
    %v2004 = vpack.c.b16 %v1572, %v1564
    %v2005 = vpack.c.b16 %v1573, %v1565
    %v2006 = vpack.c.b16 %v1574, %v1566
    %v2007 = vpack.c.b16 %v1575, %v1567
    %v2008 = vpack.c.b16 %v1576, %v1568
    %v2009 = vpack.c.b16 %v1577, %v1569
    %v2010 = vpack.c.b16 %v1578, %v1570
    %v2011 = vpack.c.b16 %v1579, %v1571
    %v2012 = vpack.c.b16 %v1588, %v1580
    %v2013 = vpack.c.b16 %v1589, %v1581
    %v2014 = vpack.c.b16 %v1590, %v1582
    %v2015 = vpack.c.b16 %v1591, %v1583
    %v2016 = vpack.c.b16 %v1592, %v1584
    %v2017 = vpack.c.b16 %v1593, %v1585
    %v2018 = vpack.c.b16 %v1594, %v1586
    %v2019 = vpack.c.b16 %v1595, %v1587
    %v2020 = vpack.c.b16 %v1604, %v1596
    %v2021 = vpack.c.b16 %v1605, %v1597
    %v2022 = vpack.c.b16 %v1606, %v1598
    %v2023 = vpack.c.b16 %v1607, %v1599
    %v2024 = vpack.c.b16 %v1608, %v1600
    %v2025 = vpack.c.b16 %v1609, %v1601
    %v2026 = vpack.c.b16 %v1610, %v1602
    %v2027 = vpack.c.b16 %v1611, %v1603
    %v2028 = vpack.c.b16 %v1620, %v1612
    %v2029 = vpack.c.b16 %v1621, %v1613
    %v2030 = vpack.c.b16 %v1622, %v1614
    %v2031 = vpack.c.b16 %v1623, %v1615
    %v2032 = vpack.c.b16 %v1624, %v1616
    %v2033 = vpack.c.b16 %v1625, %v1617
    %v2034 = vpack.c.b16 %v1626, %v1618
    %v2035 = vpack.c.b16 %v1627, %v1619
    %v2036 = vpack.c.b16 %v1636, %v1628
    %v2037 = vpack.c.b16 %v1637, %v1629
    %v2038 = vpack.c.b16 %v1638, %v1630
    %v2039 = vpack.c.b16 %v1639, %v1631
    %v2040 = vpack.c.b16 %v1640, %v1632
    %v2041 = vpack.c.b16 %v1641, %v1633
    %v2042 = vpack.c.b16 %v1642, %v1634
    %v2043 = vpack.c.b16 %v1643, %v1635
    %v2044 = vpack.c.b16 %v1652, %v1644
    %v2045 = vpack.c.b16 %v1653, %v1645
    %v2046 = vpack.c.b16 %v1654, %v1646
    %v2047 = vpack.c.b16 %v1655, %v1647
    %v2048 = vpack.c.b16 %v1656, %v1648
    %v2049 = vpack.c.b16 %v1657, %v1649
    %v2050 = vpack.c.b16 %v1658, %v1650
    %v2051 = vpack.c.b16 %v1659, %v1651
    %vm2444 = vcmask 130048
    %v2446 = vsel %vm2444, %v477, 0
    %2448 = vmatprep.subr.bf16.mxu0 %v1661
    %2449 = vmatpush1.bf16.msra.mxu0 %v1660
    %2450 = vmatprep.subr.bf16.mxu0 %v1669
    %2451 = vmatpush1.bf16.msra.mxu0 %v1668
    %2452 = vmatprep.subr.bf16.mxu0 %v1677
    %2453 = vmatpush1.bf16.msra.mxu0 %v1676
    %2454 = vmatprep.subr.bf16.mxu0 %v1685
    %2455 = vmatpush1.bf16.msra.mxu0 %v1684
    %2456 = vmatprep.subr.bf16.mxu0 %v1693
    %2457 = vmatpush1.bf16.msra.mxu0 %v1692
    %2458 = vmatprep.subr.bf16.mxu0 %v1701
    %2459 = vmatpush1.bf16.msra.mxu0 %v1700
    %2460 = vmatprep.subr.bf16.mxu0 %v1709
    %2461 = vmatpush1.bf16.msra.mxu0 %v1708
    %2462 = vmatprep.subr.bf16.mxu0 %v1717
    %2463 = vmatpush1.bf16.msra.mxu0 %v1716
    %2464 = vmatprep.subr.bf16.mxu0 %v1725
    %2465 = vmatpush1.bf16.msra.mxu0 %v1724
    %2466 = vmatprep.subr.bf16.mxu0 %v1733
    %2467 = vmatpush1.bf16.msra.mxu0 %v1732
    %2468 = vmatprep.subr.bf16.mxu0 %v1741
    %2469 = vmatpush1.bf16.msra.mxu0 %v1740
    %2470 = vmatprep.subr.bf16.mxu0 %v1749
    %2471 = vmatpush1.bf16.msra.mxu0 %v1748
    %2472 = vmatprep.subr.bf16.mxu0 %v1757
    %2473 = vmatpush1.bf16.msra.mxu0 %v1756
    %2474 = vmatprep.subr.bf16.mxu0 %v1765
    %2475 = vmatpush1.bf16.msra.mxu0 %v1764
    %2476 = vmatprep.subr.bf16.mxu0 %v1773
    %2477 = vmatpush1.bf16.msra.mxu0 %v1772
    %2478 = vmatprep.subr.bf16.mxu0 %v1781
    %2479 = vmatpush1.bf16.msra.mxu0 %v1780
    %2480 = vmatprep.mubr.bf16.mxu0 %v472
    %2481 = vmatmul.mubr.bf16.gmra.mrb[0].mxu0 %v471
    %v2482 = vpop.f32.mrb[0].mxu0
    %v2483 = vadd.f32 %v423, %v2482
    %v2484 = vpop.f32.mrb[0].mxu0
    %v2485 = vadd.f32 %v427, %v2484
    %v2486 = vpop.f32.mrb[0].mxu0
    %v2487 = vpop.f32.mrb[0].mxu0
    %2488 = vdwg.mxu0
    %2489 = vmatprep.subr.bf16.mxu0 %v1789
    %2490 = vmatpush1.bf16.msra.mxu0 %v1788
    %2491 = vmatprep.subr.bf16.mxu0 %v1797
    %2492 = vmatpush1.bf16.msra.mxu0 %v1796
    %2493 = vmatprep.subr.bf16.mxu0 %v1805
    %2494 = vmatpush1.bf16.msra.mxu0 %v1804
    %2495 = vmatprep.subr.bf16.mxu0 %v1813
    %2496 = vmatpush1.bf16.msra.mxu0 %v1812
    %2497 = vmatprep.subr.bf16.mxu0 %v1821
    %2498 = vmatpush1.bf16.msra.mxu0 %v1820
    %2499 = vmatprep.subr.bf16.mxu0 %v1829
    %2500 = vmatpush1.bf16.msra.mxu0 %v1828
    %2501 = vmatprep.subr.bf16.mxu0 %v1837
    %2502 = vmatpush1.bf16.msra.mxu0 %v1836
    %2503 = vmatprep.subr.bf16.mxu0 %v1845
    %2504 = vmatpush1.bf16.msra.mxu0 %v1844
    %2505 = vmatprep.subr.bf16.mxu0 %v1853
    %2506 = vmatpush1.bf16.msra.mxu0 %v1852
    %2507 = vmatprep.subr.bf16.mxu0 %v1861
    %2508 = vmatpush1.bf16.msra.mxu0 %v1860
    %2509 = vmatprep.subr.bf16.mxu0 %v1869
    %2510 = vmatpush1.bf16.msra.mxu0 %v1868
    %2511 = vmatprep.subr.bf16.mxu0 %v1877
    %2512 = vmatpush1.bf16.msra.mxu0 %v1876
    %2513 = vmatprep.subr.bf16.mxu0 %v1885
    %2514 = vmatpush1.bf16.msra.mxu0 %v1884
    %2515 = vmatprep.subr.bf16.mxu0 %v1893
    %2516 = vmatpush1.bf16.msra.mxu0 %v1892
    %2517 = vmatprep.subr.bf16.mxu0 %v1901
    %2518 = vmatpush1.bf16.msra.mxu0 %v1900
    %2519 = vmatprep.subr.bf16.mxu0 %v1909
    %2520 = vmatpush1.bf16.msra.mxu0 %v1908
    %2521 = vmatprep.mubr.bf16.mxu0 %v474
    %2522 = vmatmul.mubr.bf16.gmra.mrb[0].mxu0 %v473
    %v2523 = vpop.f32.mrb[0].mxu0
    %v2524 = vadd.f32 %v2483, %v2523
    %v2525 = vpop.f32.mrb[0].mxu0
    %v2526 = vadd.f32 %v2485, %v2525
    %v2527 = vpop.f32.mrb[0].mxu0
    %v2528 = vpop.f32.mrb[0].mxu0
    %2529 = vdwg.mxu0
    %2530 = vmatprep.subr.bf16.mxu0 %v1917
    %2531 = vmatpush1.bf16.msra.mxu0 %v1916
    %2532 = vmatprep.subr.bf16.mxu0 %v1925
    %2533 = vmatpush1.bf16.msra.mxu0 %v1924
    %2534 = vmatprep.subr.bf16.mxu0 %v1933
    %2535 = vmatpush1.bf16.msra.mxu0 %v1932
    %2536 = vmatprep.subr.bf16.mxu0 %v1941
    %2537 = vmatpush1.bf16.msra.mxu0 %v1940
    %2538 = vmatprep.subr.bf16.mxu0 %v1949
    %2539 = vmatpush1.bf16.msra.mxu0 %v1948
    %2540 = vmatprep.subr.bf16.mxu0 %v1957
    %2541 = vmatpush1.bf16.msra.mxu0 %v1956
    %2542 = vmatprep.subr.bf16.mxu0 %v1965
    %2543 = vmatpush1.bf16.msra.mxu0 %v1964
    %2544 = vmatprep.subr.bf16.mxu0 %v1973
    %2545 = vmatpush1.bf16.msra.mxu0 %v1972
    %2546 = vmatprep.subr.bf16.mxu0 %v1981
    %2547 = vmatpush1.bf16.msra.mxu0 %v1980
    %2548 = vmatprep.subr.bf16.mxu0 %v1989
    %2549 = vmatpush1.bf16.msra.mxu0 %v1988
    %2550 = vmatprep.subr.bf16.mxu0 %v1997
    %2551 = vmatpush1.bf16.msra.mxu0 %v1996
    %2552 = vmatprep.subr.bf16.mxu0 %v2005
    %2553 = vmatpush1.bf16.msra.mxu0 %v2004
    %2554 = vmatprep.subr.bf16.mxu0 %v2013
    %2555 = vmatpush1.bf16.msra.mxu0 %v2012
    %2556 = vmatprep.subr.bf16.mxu0 %v2021
    %2557 = vmatpush1.bf16.msra.mxu0 %v2020
    %2558 = vmatprep.subr.bf16.mxu0 %v2029
    %2559 = vmatpush1.bf16.msra.mxu0 %v2028
    %2560 = vmatprep.subr.bf16.mxu0 %v2037
    %2561 = vmatpush1.bf16.msra.mxu0 %v2036
    %2562 = vmatprep.mubr.bf16.mxu0 %v476
    %2563 = vmatmul.mubr.bf16.gmra.mrb[0].mxu0 %v475
    %v2564 = vpop.f32.mrb[0].mxu0
    %v2565 = vadd.f32 %v2524, %v2564
    %v2566 = vpop.f32.mrb[0].mxu0
    %v2567 = vadd.f32 %v2526, %v2566
    %v2568 = vpop.f32.mrb[0].mxu0
    %v2569 = vpop.f32.mrb[0].mxu0
    %2570 = vdwg.mxu0
    %2571 = vmatprep.subr.bf16.mxu0 %v2045
    %2572 = vmatpush1.bf16.msra.mxu0 %v2044
    %2573 = vmatprep.subr.bf16.mxu0 0
    %2574 = vmatpush1.bf16.msra.mxu0 0
    %2575 = vmatprep.subr.bf16.mxu0 0
    %2576 = vmatpush1.bf16.msra.mxu0 0
    %2577 = vmatprep.subr.bf16.mxu0 0
    %2578 = vmatpush1.bf16.msra.mxu0 0
    %2579 = vmatprep.subr.bf16.mxu0 0
    %2580 = vmatpush1.bf16.msra.mxu0 0
    %2581 = vmatprep.subr.bf16.mxu0 0
    %2582 = vmatpush1.bf16.msra.mxu0 0
    %2583 = vmatprep.subr.bf16.mxu0 0
    %2584 = vmatpush1.bf16.msra.mxu0 0
    %2585 = vmatprep.subr.bf16.mxu0 0
    %2586 = vmatpush1.bf16.msra.mxu0 0
    %2587 = vmatprep.subr.bf16.mxu0 0
    %2588 = vmatpush1.bf16.msra.mxu0 0
    %2589 = vmatprep.subr.bf16.mxu0 0
    %2590 = vmatpush1.bf16.msra.mxu0 0
    %2591 = vmatprep.subr.bf16.mxu0 0
    %2592 = vmatpush1.bf16.msra.mxu0 0
    %2593 = vmatprep.subr.bf16.mxu0 0
    %2594 = vmatpush1.bf16.msra.mxu0 0
    %2595 = vmatprep.subr.bf16.mxu0 0
    %2596 = vmatpush1.bf16.msra.mxu0 0
    %2597 = vmatprep.subr.bf16.mxu0 0
    %2598 = vmatpush1.bf16.msra.mxu0 0
    %2599 = vmatprep.subr.bf16.mxu0 0
    %2600 = vmatpush1.bf16.msra.mxu0 0
    %2601 = vmatprep.subr.bf16.mxu0 0
    %2602 = vmatpush1.bf16.msra.mxu0 0
    %2603 = vmatprep.mubr.bf16.mxu0 0
    %2604 = vmatmul.mubr.bf16.gmra.mrb[0].mxu0 %v2446
    %v2605 = vpop.f32.mrb[0].mxu0
    %v2606 = vadd.f32 %v2565, %v2605
    %v2607 = vpop.f32.mrb[0].mxu0
    %v2608 = vadd.f32 %v2567, %v2607
    %v2609 = vpop.f32.mrb[0].mxu0
    %v2610 = vpop.f32.mrb[0].mxu0
    %2611 = vdwg.mxu0
    %2612 = vmatprep.subr.bf16.mxu0 %v1663
    %2613 = vmatpush1.bf16.msra.mxu0 %v1662
    %2614 = vmatprep.subr.bf16.mxu0 %v1671
    %2615 = vmatpush1.bf16.msra.mxu0 %v1670
    %2616 = vmatprep.subr.bf16.mxu0 %v1679
    %2617 = vmatpush1.bf16.msra.mxu0 %v1678
    %2618 = vmatprep.subr.bf16.mxu0 %v1687
    %2619 = vmatpush1.bf16.msra.mxu0 %v1686
    %2620 = vmatprep.subr.bf16.mxu0 %v1695
    %2621 = vmatpush1.bf16.msra.mxu0 %v1694
    %2622 = vmatprep.subr.bf16.mxu0 %v1703
    %2623 = vmatpush1.bf16.msra.mxu0 %v1702
    %2624 = vmatprep.subr.bf16.mxu0 %v1711
    %2625 = vmatpush1.bf16.msra.mxu0 %v1710
    %2626 = vmatprep.subr.bf16.mxu0 %v1719
    %2627 = vmatpush1.bf16.msra.mxu0 %v1718
    %2628 = vmatprep.subr.bf16.mxu0 %v1727
    %2629 = vmatpush1.bf16.msra.mxu0 %v1726
    %2630 = vmatprep.subr.bf16.mxu0 %v1735
    %2631 = vmatpush1.bf16.msra.mxu0 %v1734
    %2632 = vmatprep.subr.bf16.mxu0 %v1743
    %2633 = vmatpush1.bf16.msra.mxu0 %v1742
    %2634 = vmatprep.subr.bf16.mxu0 %v1751
    %2635 = vmatpush1.bf16.msra.mxu0 %v1750
    %2636 = vmatprep.subr.bf16.mxu0 %v1759
    %2637 = vmatpush1.bf16.msra.mxu0 %v1758
    %2638 = vmatprep.subr.bf16.mxu0 %v1767
    %2639 = vmatpush1.bf16.msra.mxu0 %v1766
    %2640 = vmatprep.subr.bf16.mxu0 %v1775
    %2641 = vmatpush1.bf16.msra.mxu0 %v1774
    %2642 = vmatprep.subr.bf16.mxu0 %v1783
    %2643 = vmatpush1.bf16.msra.mxu0 %v1782
    %2644 = vmatprep.mubr.bf16.mxu0 %v472
    %2645 = vmatmul.mubr.bf16.gmra.mrb[0].mxu0 %v471
    %v2646 = vpop.f32.mrb[0].mxu0
    %v2647 = vadd.f32 %v431, %v2646
    %v2648 = vpop.f32.mrb[0].mxu0
    %v2649 = vadd.f32 %v435, %v2648
    %v2650 = vpop.f32.mrb[0].mxu0
    %v2651 = vpop.f32.mrb[0].mxu0
    %2652 = vdwg.mxu0
    %2653 = vmatprep.subr.bf16.mxu0 %v1791
    %2654 = vmatpush1.bf16.msra.mxu0 %v1790
    %2655 = vmatprep.subr.bf16.mxu0 %v1799
    %2656 = vmatpush1.bf16.msra.mxu0 %v1798
    %2657 = vmatprep.subr.bf16.mxu0 %v1807
    %2658 = vmatpush1.bf16.msra.mxu0 %v1806
    %2659 = vmatprep.subr.bf16.mxu0 %v1815
    %2660 = vmatpush1.bf16.msra.mxu0 %v1814
    %2661 = vmatprep.subr.bf16.mxu0 %v1823
    %2662 = vmatpush1.bf16.msra.mxu0 %v1822
    %2663 = vmatprep.subr.bf16.mxu0 %v1831
    %2664 = vmatpush1.bf16.msra.mxu0 %v1830
    %2665 = vmatprep.subr.bf16.mxu0 %v1839
    %2666 = vmatpush1.bf16.msra.mxu0 %v1838
    %2667 = vmatprep.subr.bf16.mxu0 %v1847
    %2668 = vmatpush1.bf16.msra.mxu0 %v1846
    %2669 = vmatprep.subr.bf16.mxu0 %v1855
    %2670 = vmatpush1.bf16.msra.mxu0 %v1854
    %2671 = vmatprep.subr.bf16.mxu0 %v1863
    %2672 = vmatpush1.bf16.msra.mxu0 %v1862
    %2673 = vmatprep.subr.bf16.mxu0 %v1871
    %2674 = vmatpush1.bf16.msra.mxu0 %v1870
    %2675 = vmatprep.subr.bf16.mxu0 %v1879
    %2676 = vmatpush1.bf16.msra.mxu0 %v1878
    %2677 = vmatprep.subr.bf16.mxu0 %v1887
    %2678 = vmatpush1.bf16.msra.mxu0 %v1886
    %2679 = vmatprep.subr.bf16.mxu0 %v1895
    %2680 = vmatpush1.bf16.msra.mxu0 %v1894
    %2681 = vmatprep.subr.bf16.mxu0 %v1903
    %2682 = vmatpush1.bf16.msra.mxu0 %v1902
    %2683 = vmatprep.subr.bf16.mxu0 %v1911
    %2684 = vmatpush1.bf16.msra.mxu0 %v1910
    %2685 = vmatprep.mubr.bf16.mxu0 %v474
    %2686 = vmatmul.mubr.bf16.gmra.mrb[0].mxu0 %v473
    %v2687 = vpop.f32.mrb[0].mxu0
    %v2688 = vadd.f32 %v2647, %v2687
    %v2689 = vpop.f32.mrb[0].mxu0
    %v2690 = vadd.f32 %v2649, %v2689
    %v2691 = vpop.f32.mrb[0].mxu0
    %v2692 = vpop.f32.mrb[0].mxu0
    %2693 = vdwg.mxu0
    %2694 = vmatprep.subr.bf16.mxu0 %v1919
    %2695 = vmatpush1.bf16.msra.mxu0 %v1918
    %2696 = vmatprep.subr.bf16.mxu0 %v1927
    %2697 = vmatpush1.bf16.msra.mxu0 %v1926
    %2698 = vmatprep.subr.bf16.mxu0 %v1935
    %2699 = vmatpush1.bf16.msra.mxu0 %v1934
    %2700 = vmatprep.subr.bf16.mxu0 %v1943
    %2701 = vmatpush1.bf16.msra.mxu0 %v1942
    %2702 = vmatprep.subr.bf16.mxu0 %v1951
    %2703 = vmatpush1.bf16.msra.mxu0 %v1950
    %2704 = vmatprep.subr.bf16.mxu0 %v1959
    %2705 = vmatpush1.bf16.msra.mxu0 %v1958
    %2706 = vmatprep.subr.bf16.mxu0 %v1967
    %2707 = vmatpush1.bf16.msra.mxu0 %v1966
    %2708 = vmatprep.subr.bf16.mxu0 %v1975
    %2709 = vmatpush1.bf16.msra.mxu0 %v1974
    %2710 = vmatprep.subr.bf16.mxu0 %v1983
    %2711 = vmatpush1.bf16.msra.mxu0 %v1982
    %2712 = vmatprep.subr.bf16.mxu0 %v1991
    %2713 = vmatpush1.bf16.msra.mxu0 %v1990
    %2714 = vmatprep.subr.bf16.mxu0 %v1999
    %2715 = vmatpush1.bf16.msra.mxu0 %v1998
    %2716 = vmatprep.subr.bf16.mxu0 %v2007
    %2717 = vmatpush1.bf16.msra.mxu0 %v2006
    %2718 = vmatprep.subr.bf16.mxu0 %v2015
    %2719 = vmatpush1.bf16.msra.mxu0 %v2014
    %2720 = vmatprep.subr.bf16.mxu0 %v2023
    %2721 = vmatpush1.bf16.msra.mxu0 %v2022
    %2722 = vmatprep.subr.bf16.mxu0 %v2031
    %2723 = vmatpush1.bf16.msra.mxu0 %v2030
    %2724 = vmatprep.subr.bf16.mxu0 %v2039
    %2725 = vmatpush1.bf16.msra.mxu0 %v2038
    %2726 = vmatprep.mubr.bf16.mxu0 %v476
    %2727 = vmatmul.mubr.bf16.gmra.mrb[0].mxu0 %v475
    %v2728 = vpop.f32.mrb[0].mxu0
    %v2729 = vadd.f32 %v2688, %v2728
    %v2730 = vpop.f32.mrb[0].mxu0
    %v2731 = vadd.f32 %v2690, %v2730
    %v2732 = vpop.f32.mrb[0].mxu0
    %v2733 = vpop.f32.mrb[0].mxu0
    %2734 = vdwg.mxu0
    %2735 = vmatprep.subr.bf16.mxu0 %v2047
    %2736 = vmatpush1.bf16.msra.mxu0 %v2046
    %2737 = vmatprep.subr.bf16.mxu0 0
    %2738 = vmatpush1.bf16.msra.mxu0 0
    %2739 = vmatprep.subr.bf16.mxu0 0
    %2740 = vmatpush1.bf16.msra.mxu0 0
    %2741 = vmatprep.subr.bf16.mxu0 0
    %2742 = vmatpush1.bf16.msra.mxu0 0
    %2743 = vmatprep.subr.bf16.mxu0 0
    %2744 = vmatpush1.bf16.msra.mxu0 0
    %2745 = vmatprep.subr.bf16.mxu0 0
    %2746 = vmatpush1.bf16.msra.mxu0 0
    %2747 = vmatprep.subr.bf16.mxu0 0
    %2748 = vmatpush1.bf16.msra.mxu0 0
    %2749 = vmatprep.subr.bf16.mxu0 0
    %2750 = vmatpush1.bf16.msra.mxu0 0
    %2751 = vmatprep.subr.bf16.mxu0 0
    %2752 = vmatpush1.bf16.msra.mxu0 0
    %2753 = vmatprep.subr.bf16.mxu0 0
    %2754 = vmatpush1.bf16.msra.mxu0 0
    %2755 = vmatprep.subr.bf16.mxu0 0
    %2756 = vmatpush1.bf16.msra.mxu0 0
    %2757 = vmatprep.subr.bf16.mxu0 0
    %2758 = vmatpush1.bf16.msra.mxu0 0
    %2759 = vmatprep.subr.bf16.mxu0 0
    %2760 = vmatpush1.bf16.msra.mxu0 0
    %2761 = vmatprep.subr.bf16.mxu0 0
    %2762 = vmatpush1.bf16.msra.mxu0 0
    %2763 = vmatprep.subr.bf16.mxu0 0
    %2764 = vmatpush1.bf16.msra.mxu0 0
    %2765 = vmatprep.subr.bf16.mxu0 0
    %2766 = vmatpush1.bf16.msra.mxu0 0
    %2767 = vmatprep.mubr.bf16.mxu0 0
    %2768 = vmatmul.mubr.bf16.gmra.mrb[0].mxu0 %v2446
    %v2769 = vpop.f32.mrb[0].mxu0
    %v2770 = vadd.f32 %v2729, %v2769
    %v2771 = vpop.f32.mrb[0].mxu0
    %v2772 = vadd.f32 %v2731, %v2771
    %v2773 = vpop.f32.mrb[0].mxu0
    %v2774 = vpop.f32.mrb[0].mxu0
    %2775 = vdwg.mxu0
    %2776 = vmatprep.subr.bf16.mxu0 %v1665
    %2777 = vmatpush1.bf16.msra.mxu0 %v1664
    %2778 = vmatprep.subr.bf16.mxu0 %v1673
    %2779 = vmatpush1.bf16.msra.mxu0 %v1672
    %2780 = vmatprep.subr.bf16.mxu0 %v1681
    %2781 = vmatpush1.bf16.msra.mxu0 %v1680
    %2782 = vmatprep.subr.bf16.mxu0 %v1689
    %2783 = vmatpush1.bf16.msra.mxu0 %v1688
    %2784 = vmatprep.subr.bf16.mxu0 %v1697
    %2785 = vmatpush1.bf16.msra.mxu0 %v1696
    %2786 = vmatprep.subr.bf16.mxu0 %v1705
    %2787 = vmatpush1.bf16.msra.mxu0 %v1704
    %2788 = vmatprep.subr.bf16.mxu0 %v1713
    %2789 = vmatpush1.bf16.msra.mxu0 %v1712
    %2790 = vmatprep.subr.bf16.mxu0 %v1721
    %2791 = vmatpush1.bf16.msra.mxu0 %v1720
    %2792 = vmatprep.subr.bf16.mxu0 %v1729
    %2793 = vmatpush1.bf16.msra.mxu0 %v1728
    %2794 = vmatprep.subr.bf16.mxu0 %v1737
    %2795 = vmatpush1.bf16.msra.mxu0 %v1736
    %2796 = vmatprep.subr.bf16.mxu0 %v1745
    %2797 = vmatpush1.bf16.msra.mxu0 %v1744
    %2798 = vmatprep.subr.bf16.mxu0 %v1753
    %2799 = vmatpush1.bf16.msra.mxu0 %v1752
    %2800 = vmatprep.subr.bf16.mxu0 %v1761
    %2801 = vmatpush1.bf16.msra.mxu0 %v1760
    %2802 = vmatprep.subr.bf16.mxu0 %v1769
    %2803 = vmatpush1.bf16.msra.mxu0 %v1768
    %2804 = vmatprep.subr.bf16.mxu0 %v1777
    %2805 = vmatpush1.bf16.msra.mxu0 %v1776
    %2806 = vmatprep.subr.bf16.mxu0 %v1785
    %2807 = vmatpush1.bf16.msra.mxu0 %v1784
    %2808 = vmatprep.mubr.bf16.mxu0 %v472
    %2809 = vmatmul.mubr.bf16.gmra.mrb[0].mxu0 %v471
    %v2810 = vpop.f32.mrb[0].mxu0
    %v2811 = vadd.f32 %v439, %v2810
    %v2812 = vpop.f32.mrb[0].mxu0
    %v2813 = vadd.f32 %v443, %v2812
    %v2814 = vpop.f32.mrb[0].mxu0
    %v2815 = vpop.f32.mrb[0].mxu0
    %2816 = vdwg.mxu0
    %2817 = vmatprep.subr.bf16.mxu0 %v1793
    %2818 = vmatpush1.bf16.msra.mxu0 %v1792
    %2819 = vmatprep.subr.bf16.mxu0 %v1801
    %2820 = vmatpush1.bf16.msra.mxu0 %v1800
    %2821 = vmatprep.subr.bf16.mxu0 %v1809
    %2822 = vmatpush1.bf16.msra.mxu0 %v1808
    %2823 = vmatprep.subr.bf16.mxu0 %v1817
    %2824 = vmatpush1.bf16.msra.mxu0 %v1816
    %2825 = vmatprep.subr.bf16.mxu0 %v1825
    %2826 = vmatpush1.bf16.msra.mxu0 %v1824
    %2827 = vmatprep.subr.bf16.mxu0 %v1833
    %2828 = vmatpush1.bf16.msra.mxu0 %v1832
    %2829 = vmatprep.subr.bf16.mxu0 %v1841
    %2830 = vmatpush1.bf16.msra.mxu0 %v1840
    %2831 = vmatprep.subr.bf16.mxu0 %v1849
    %2832 = vmatpush1.bf16.msra.mxu0 %v1848
    %2833 = vmatprep.subr.bf16.mxu0 %v1857
    %2834 = vmatpush1.bf16.msra.mxu0 %v1856
    %2835 = vmatprep.subr.bf16.mxu0 %v1865
    %2836 = vmatpush1.bf16.msra.mxu0 %v1864
    %2837 = vmatprep.subr.bf16.mxu0 %v1873
    %2838 = vmatpush1.bf16.msra.mxu0 %v1872
    %2839 = vmatprep.subr.bf16.mxu0 %v1881
    %2840 = vmatpush1.bf16.msra.mxu0 %v1880
    %2841 = vmatprep.subr.bf16.mxu0 %v1889
    %2842 = vmatpush1.bf16.msra.mxu0 %v1888
    %2843 = vmatprep.subr.bf16.mxu0 %v1897
    %2844 = vmatpush1.bf16.msra.mxu0 %v1896
    %2845 = vmatprep.subr.bf16.mxu0 %v1905
    %2846 = vmatpush1.bf16.msra.mxu0 %v1904
    %2847 = vmatprep.subr.bf16.mxu0 %v1913
    %2848 = vmatpush1.bf16.msra.mxu0 %v1912
    %2849 = vmatprep.mubr.bf16.mxu0 %v474
    %2850 = vmatmul.mubr.bf16.gmra.mrb[0].mxu0 %v473
    %v2851 = vpop.f32.mrb[0].mxu0
    %v2852 = vadd.f32 %v2811, %v2851
    %v2853 = vpop.f32.mrb[0].mxu0
    %v2854 = vadd.f32 %v2813, %v2853
    %v2855 = vpop.f32.mrb[0].mxu0
    %v2856 = vpop.f32.mrb[0].mxu0
    %2857 = vdwg.mxu0
    %2858 = vmatprep.subr.bf16.mxu0 %v1921
    %2859 = vmatpush1.bf16.msra.mxu0 %v1920
    %2860 = vmatprep.subr.bf16.mxu0 %v1929
    %2861 = vmatpush1.bf16.msra.mxu0 %v1928
    %2862 = vmatprep.subr.bf16.mxu0 %v1937
    %2863 = vmatpush1.bf16.msra.mxu0 %v1936
    %2864 = vmatprep.subr.bf16.mxu0 %v1945
    %2865 = vmatpush1.bf16.msra.mxu0 %v1944
    %2866 = vmatprep.subr.bf16.mxu0 %v1953
    %2867 = vmatpush1.bf16.msra.mxu0 %v1952
    %2868 = vmatprep.subr.bf16.mxu0 %v1961
    %2869 = vmatpush1.bf16.msra.mxu0 %v1960
    %2870 = vmatprep.subr.bf16.mxu0 %v1969
    %2871 = vmatpush1.bf16.msra.mxu0 %v1968
    %2872 = vmatprep.subr.bf16.mxu0 %v1977
    %2873 = vmatpush1.bf16.msra.mxu0 %v1976
    %2874 = vmatprep.subr.bf16.mxu0 %v1985
    %2875 = vmatpush1.bf16.msra.mxu0 %v1984
    %2876 = vmatprep.subr.bf16.mxu0 %v1993
    %2877 = vmatpush1.bf16.msra.mxu0 %v1992
    %2878 = vmatprep.subr.bf16.mxu0 %v2001
    %2879 = vmatpush1.bf16.msra.mxu0 %v2000
    %2880 = vmatprep.subr.bf16.mxu0 %v2009
    %2881 = vmatpush1.bf16.msra.mxu0 %v2008
    %2882 = vmatprep.subr.bf16.mxu0 %v2017
    %2883 = vmatpush1.bf16.msra.mxu0 %v2016
    %2884 = vmatprep.subr.bf16.mxu0 %v2025
    %2885 = vmatpush1.bf16.msra.mxu0 %v2024
    %2886 = vmatprep.subr.bf16.mxu0 %v2033
    %2887 = vmatpush1.bf16.msra.mxu0 %v2032
    %2888 = vmatprep.subr.bf16.mxu0 %v2041
    %2889 = vmatpush1.bf16.msra.mxu0 %v2040
    %2890 = vmatprep.mubr.bf16.mxu0 %v476
    %2891 = vmatmul.mubr.bf16.gmra.mrb[0].mxu0 %v475
    %v2892 = vpop.f32.mrb[0].mxu0
    %v2893 = vadd.f32 %v2852, %v2892
    %v2894 = vpop.f32.mrb[0].mxu0
    %v2895 = vadd.f32 %v2854, %v2894
    %v2896 = vpop.f32.mrb[0].mxu0
    %v2897 = vpop.f32.mrb[0].mxu0
    %2898 = vdwg.mxu0
    %2899 = vmatprep.subr.bf16.mxu0 %v2049
    %2900 = vmatpush1.bf16.msra.mxu0 %v2048
    %2901 = vmatprep.subr.bf16.mxu0 0
    %2902 = vmatpush1.bf16.msra.mxu0 0
    %2903 = vmatprep.subr.bf16.mxu0 0
    %2904 = vmatpush1.bf16.msra.mxu0 0
    %2905 = vmatprep.subr.bf16.mxu0 0
    %2906 = vmatpush1.bf16.msra.mxu0 0
    %2907 = vmatprep.subr.bf16.mxu0 0
    %2908 = vmatpush1.bf16.msra.mxu0 0
    %2909 = vmatprep.subr.bf16.mxu0 0
    %2910 = vmatpush1.bf16.msra.mxu0 0
    %2911 = vmatprep.subr.bf16.mxu0 0
    %2912 = vmatpush1.bf16.msra.mxu0 0
    %2913 = vmatprep.subr.bf16.mxu0 0
    %2914 = vmatpush1.bf16.msra.mxu0 0
    %2915 = vmatprep.subr.bf16.mxu0 0
    %2916 = vmatpush1.bf16.msra.mxu0 0
    %2917 = vmatprep.subr.bf16.mxu0 0
    %2918 = vmatpush1.bf16.msra.mxu0 0
    %2919 = vmatprep.subr.bf16.mxu0 0
    %2920 = vmatpush1.bf16.msra.mxu0 0
    %2921 = vmatprep.subr.bf16.mxu0 0
    %2922 = vmatpush1.bf16.msra.mxu0 0
    %2923 = vmatprep.subr.bf16.mxu0 0
    %2924 = vmatpush1.bf16.msra.mxu0 0
    %2925 = vmatprep.subr.bf16.mxu0 0
    %2926 = vmatpush1.bf16.msra.mxu0 0
    %2927 = vmatprep.subr.bf16.mxu0 0
    %2928 = vmatpush1.bf16.msra.mxu0 0
    %2929 = vmatprep.subr.bf16.mxu0 0
    %2930 = vmatpush1.bf16.msra.mxu0 0
    %2931 = vmatprep.mubr.bf16.mxu0 0
    %2932 = vmatmul.mubr.bf16.gmra.mrb[0].mxu0 %v2446
    %v2933 = vpop.f32.mrb[0].mxu0
    %v2934 = vadd.f32 %v2893, %v2933
    %v2935 = vpop.f32.mrb[0].mxu0
    %v2936 = vadd.f32 %v2895, %v2935
    %v2937 = vpop.f32.mrb[0].mxu0
    %v2938 = vpop.f32.mrb[0].mxu0
    %2939 = vdwg.mxu0
    %2940 = vmatprep.subr.bf16.mxu0 %v1667
    %2941 = vmatpush1.bf16.msra.mxu0 %v1666
    %2942 = vmatprep.subr.bf16.mxu0 %v1675
    %2943 = vmatpush1.bf16.msra.mxu0 %v1674
    %2944 = vmatprep.subr.bf16.mxu0 %v1683
    %2945 = vmatpush1.bf16.msra.mxu0 %v1682
    %2946 = vmatprep.subr.bf16.mxu0 %v1691
    %2947 = vmatpush1.bf16.msra.mxu0 %v1690
    %2948 = vmatprep.subr.bf16.mxu0 %v1699
    %2949 = vmatpush1.bf16.msra.mxu0 %v1698
    %2950 = vmatprep.subr.bf16.mxu0 %v1707
    %2951 = vmatpush1.bf16.msra.mxu0 %v1706
    %2952 = vmatprep.subr.bf16.mxu0 %v1715
    %2953 = vmatpush1.bf16.msra.mxu0 %v1714
    %2954 = vmatprep.subr.bf16.mxu0 %v1723
    %2955 = vmatpush1.bf16.msra.mxu0 %v1722
    %2956 = vmatprep.subr.bf16.mxu0 %v1731
    %2957 = vmatpush1.bf16.msra.mxu0 %v1730
    %2958 = vmatprep.subr.bf16.mxu0 %v1739
    %2959 = vmatpush1.bf16.msra.mxu0 %v1738
    %2960 = vmatprep.subr.bf16.mxu0 %v1747
    %2961 = vmatpush1.bf16.msra.mxu0 %v1746
    %2962 = vmatprep.subr.bf16.mxu0 %v1755
    %2963 = vmatpush1.bf16.msra.mxu0 %v1754
    %2964 = vmatprep.subr.bf16.mxu0 %v1763
    %2965 = vmatpush1.bf16.msra.mxu0 %v1762
    %2966 = vmatprep.subr.bf16.mxu0 %v1771
    %2967 = vmatpush1.bf16.msra.mxu0 %v1770
    %2968 = vmatprep.subr.bf16.mxu0 %v1779
    %2969 = vmatpush1.bf16.msra.mxu0 %v1778
    %2970 = vmatprep.subr.bf16.mxu0 %v1787
    %2971 = vmatpush1.bf16.msra.mxu0 %v1786
    %2972 = vmatprep.mubr.bf16.mxu0 %v472
    %2973 = vmatmul.mubr.bf16.gmra.mrb[0].mxu0 %v471
    %v2974 = vpop.f32.mrb[0].mxu0
    %v2975 = vadd.f32 %v447, %v2974
    %v2976 = vpop.f32.mrb[0].mxu0
    %v2977 = vadd.f32 %v451, %v2976
    %v2978 = vpop.f32.mrb[0].mxu0
    %v2979 = vpop.f32.mrb[0].mxu0
    %2980 = vdwg.mxu0
    %2981 = vmatprep.subr.bf16.mxu0 %v1795
    %2982 = vmatpush1.bf16.msra.mxu0 %v1794
    %2983 = vmatprep.subr.bf16.mxu0 %v1803
    %2984 = vmatpush1.bf16.msra.mxu0 %v1802
    %2985 = vmatprep.subr.bf16.mxu0 %v1811
    %2986 = vmatpush1.bf16.msra.mxu0 %v1810
    %2987 = vmatprep.subr.bf16.mxu0 %v1819
    %2988 = vmatpush1.bf16.msra.mxu0 %v1818
    %2989 = vmatprep.subr.bf16.mxu0 %v1827
    %2990 = vmatpush1.bf16.msra.mxu0 %v1826
    %2991 = vmatprep.subr.bf16.mxu0 %v1835
    %2992 = vmatpush1.bf16.msra.mxu0 %v1834
    %2993 = vmatprep.subr.bf16.mxu0 %v1843
    %2994 = vmatpush1.bf16.msra.mxu0 %v1842
    %2995 = vmatprep.subr.bf16.mxu0 %v1851
    %2996 = vmatpush1.bf16.msra.mxu0 %v1850
    %2997 = vmatprep.subr.bf16.mxu0 %v1859
    %2998 = vmatpush1.bf16.msra.mxu0 %v1858
    %2999 = vmatprep.subr.bf16.mxu0 %v1867
    %3000 = vmatpush1.bf16.msra.mxu0 %v1866
    %3001 = vmatprep.subr.bf16.mxu0 %v1875
    %3002 = vmatpush1.bf16.msra.mxu0 %v1874
    %3003 = vmatprep.subr.bf16.mxu0 %v1883
    %3004 = vmatpush1.bf16.msra.mxu0 %v1882
    %3005 = vmatprep.subr.bf16.mxu0 %v1891
    %3006 = vmatpush1.bf16.msra.mxu0 %v1890
    %3007 = vmatprep.subr.bf16.mxu0 %v1899
    %3008 = vmatpush1.bf16.msra.mxu0 %v1898
    %3009 = vmatprep.subr.bf16.mxu0 %v1907
    %3010 = vmatpush1.bf16.msra.mxu0 %v1906
    %3011 = vmatprep.subr.bf16.mxu0 %v1915
    %3012 = vmatpush1.bf16.msra.mxu0 %v1914
    %3013 = vmatprep.mubr.bf16.mxu0 %v474
    %3014 = vmatmul.mubr.bf16.gmra.mrb[0].mxu0 %v473
    %v3015 = vpop.f32.mrb[0].mxu0
    %v3016 = vadd.f32 %v2975, %v3015
    %v3017 = vpop.f32.mrb[0].mxu0
    %v3018 = vadd.f32 %v2977, %v3017
    %v3019 = vpop.f32.mrb[0].mxu0
    %v3020 = vpop.f32.mrb[0].mxu0
    %3021 = vdwg.mxu0
    %3022 = vmatprep.subr.bf16.mxu0 %v1923
    %3023 = vmatpush1.bf16.msra.mxu0 %v1922
    %3024 = vmatprep.subr.bf16.mxu0 %v1931
    %3025 = vmatpush1.bf16.msra.mxu0 %v1930
    %3026 = vmatprep.subr.bf16.mxu0 %v1939
    %3027 = vmatpush1.bf16.msra.mxu0 %v1938
    %3028 = vmatprep.subr.bf16.mxu0 %v1947
    %3029 = vmatpush1.bf16.msra.mxu0 %v1946
    %3030 = vmatprep.subr.bf16.mxu0 %v1955
    %3031 = vmatpush1.bf16.msra.mxu0 %v1954
    %3032 = vmatprep.subr.bf16.mxu0 %v1963
    %3033 = vmatpush1.bf16.msra.mxu0 %v1962
    %3034 = vmatprep.subr.bf16.mxu0 %v1971
    %3035 = vmatpush1.bf16.msra.mxu0 %v1970
    %3036 = vmatprep.subr.bf16.mxu0 %v1979
    %3037 = vmatpush1.bf16.msra.mxu0 %v1978
    %3038 = vmatprep.subr.bf16.mxu0 %v1987
    %3039 = vmatpush1.bf16.msra.mxu0 %v1986
    %3040 = vmatprep.subr.bf16.mxu0 %v1995
    %3041 = vmatpush1.bf16.msra.mxu0 %v1994
    %3042 = vmatprep.subr.bf16.mxu0 %v2003
    %3043 = vmatpush1.bf16.msra.mxu0 %v2002
    %3044 = vmatprep.subr.bf16.mxu0 %v2011
    %3045 = vmatpush1.bf16.msra.mxu0 %v2010
    %3046 = vmatprep.subr.bf16.mxu0 %v2019
    %3047 = vmatpush1.bf16.msra.mxu0 %v2018
    %3048 = vmatprep.subr.bf16.mxu0 %v2027
    %3049 = vmatpush1.bf16.msra.mxu0 %v2026
    %3050 = vmatprep.subr.bf16.mxu0 %v2035
    %3051 = vmatpush1.bf16.msra.mxu0 %v2034
    %3052 = vmatprep.subr.bf16.mxu0 %v2043
    %3053 = vmatpush1.bf16.msra.mxu0 %v2042
    %3054 = vmatprep.mubr.bf16.mxu0 %v476
    %3055 = vmatmul.mubr.bf16.gmra.mrb[0].mxu0 %v475
    %v3056 = vpop.f32.mrb[0].mxu0
    %v3057 = vadd.f32 %v3016, %v3056
    %v3058 = vpop.f32.mrb[0].mxu0
    %v3059 = vadd.f32 %v3018, %v3058
    %v3060 = vpop.f32.mrb[0].mxu0
    %v3061 = vpop.f32.mrb[0].mxu0
    %3062 = vdwg.mxu0
    %3063 = vmatprep.subr.bf16.mxu0 %v2051
    %3064 = vmatpush1.bf16.msra.mxu0 %v2050
    %3065 = vmatprep.subr.bf16.mxu0 0
    %3066 = vmatpush1.bf16.msra.mxu0 0
    %3067 = vmatprep.subr.bf16.mxu0 0
    %3068 = vmatpush1.bf16.msra.mxu0 0
    %3069 = vmatprep.subr.bf16.mxu0 0
    %3070 = vmatpush1.bf16.msra.mxu0 0
    %3071 = vmatprep.subr.bf16.mxu0 0
    %3072 = vmatpush1.bf16.msra.mxu0 0
    %3073 = vmatprep.subr.bf16.mxu0 0
    %3074 = vmatpush1.bf16.msra.mxu0 0
    %3075 = vmatprep.subr.bf16.mxu0 0
    %3076 = vmatpush1.bf16.msra.mxu0 0
    %3077 = vmatprep.subr.bf16.mxu0 0
    %3078 = vmatpush1.bf16.msra.mxu0 0
    %3079 = vmatprep.subr.bf16.mxu0 0
    %3080 = vmatpush1.bf16.msra.mxu0 0
    %3081 = vmatprep.subr.bf16.mxu0 0
    %3082 = vmatpush1.bf16.msra.mxu0 0
    %3083 = vmatprep.subr.bf16.mxu0 0
    %3084 = vmatpush1.bf16.msra.mxu0 0
    %3085 = vmatprep.subr.bf16.mxu0 0
    %3086 = vmatpush1.bf16.msra.mxu0 0
    %3087 = vmatprep.subr.bf16.mxu0 0
    %3088 = vmatpush1.bf16.msra.mxu0 0
    %3089 = vmatprep.subr.bf16.mxu0 0
    %3090 = vmatpush1.bf16.msra.mxu0 0
    %3091 = vmatprep.subr.bf16.mxu0 0
    %3092 = vmatpush1.bf16.msra.mxu0 0
    %3093 = vmatprep.subr.bf16.mxu0 0
    %3094 = vmatpush1.bf16.msra.mxu0 0
    %3095 = vmatprep.mubr.bf16.mxu0 0
    %3096 = vmatmul.mubr.bf16.gmra.mrb[0].mxu0 %v2446
    %v3097 = vpop.f32.mrb[0].mxu0
    %v3098 = vadd.f32 %v3057, %v3097
    %v3099 = vpop.f32.mrb[0].mxu0
    %v3100 = vadd.f32 %v3059, %v3099
    %v3101 = vpop.f32.mrb[0].mxu0
    %v3102 = vpop.f32.mrb[0].mxu0
    %3103 = vdwg.mxu0
    %v3104 = vsub.f32 0.0, %v2606
    %v3105 = vsub.f32 0.0, %v2608
    %v3106 = vsub.f32 0.0, %v2770
    %v3107 = vsub.f32 0.0, %v2772
    %v3108 = vsub.f32 0.0, %v2934
    %v3109 = vsub.f32 0.0, %v2936
    %v3110 = vsub.f32 0.0, %v3098
    %v3111 = vsub.f32 0.0, %v3100
    %v3112 = vmul.f32 %v3104, 1.442695
    %v3113 = vpow.pop %v3112
    %v3114 = vmul.f32 %v3105, 1.442695
    %v3115 = vpow.pop %v3114
    %v3116 = vmul.f32 %v3106, 1.442695
    %v3117 = vpow.pop %v3116
    %v3118 = vmul.f32 %v3107, 1.442695
    %v3119 = vpow.pop %v3118
    %v3120 = vmul.f32 %v3108, 1.442695
    %v3121 = vpow.pop %v3120
    %v3122 = vmul.f32 %v3109, 1.442695
    %v3123 = vpow.pop %v3122
    %v3124 = vmul.f32 %v3110, 1.442695
    %v3125 = vpow.pop %v3124
    %v3126 = vmul.f32 %v3111, 1.442695
    %v3127 = vpow.pop %v3126
    %v3128 = vadd.f32 %v3113, 1.0
    %v3129 = vadd.f32 %v3115, 1.0
    %v3130 = vadd.f32 %v3117, 1.0
    %v3131 = vadd.f32 %v3119, 1.0
    %v3132 = vadd.f32 %v3121, 1.0
    %v3133 = vadd.f32 %v3123, 1.0
    %v3134 = vadd.f32 %v3125, 1.0
    %v3135 = vadd.f32 %v3127, 1.0
    %v3136 = vrcp.pop %v3128
    %v3137 = vrcp.pop %v3129
    %v3138 = vrcp.pop %v3130
    %v3139 = vrcp.pop %v3131
    %v3140 = vrcp.pop %v3132
    %v3141 = vrcp.pop %v3133
    %v3142 = vrcp.pop %v3134
    %v3143 = vrcp.pop %v3135
    %v3144 = vpack.c.bf16 %v3136, %v3136
    %v3145 = vpack.c.bf16 %v3137, %v3137
    %v3146 = vpack.c.bf16 %v3138, %v3138
    %v3147 = vpack.c.bf16 %v3139, %v3139
    %v3148 = vpack.c.bf16 %v3140, %v3140
    %v3149 = vpack.c.bf16 %v3141, %v3141
    %v3150 = vpack.c.bf16 %v3142, %v3142
    %v3151 = vpack.c.bf16 %v3143, %v3143
    %v3152 = vld [vmem:[%s3] sm:$0xf]
    %v3153 = vld [vmem:[%s3 + $0x4] sm:$0xf]
    %v3154 = vld [vmem:[%s3 + $0x8] sm:$0xf]
    %v3155 = vld [vmem:[%s3 + $0xc] sm:$0xf]
    %v3156 = vld [vmem:[%s3 + $0x10] sm:$0xf]
    %v3157 = vld [vmem:[%s3 + $0x14] sm:$0xf]
    %v3158 = vld [vmem:[%s3 + $0x18] sm:$0xf]
    %v3159 = vld [vmem:[%s3 + $0x1c] sm:$0xf]
    %v3160 = vld [vmem:[%s3 + $0x20] sm:$0xf]
    %v3161 = vld [vmem:[%s3 + $0x24] sm:$0xf]
    %v3162 = vld [vmem:[%s3 + $0x28] sm:$0xf]
    %v3163 = vld [vmem:[%s3 + $0x2c] sm:$0xf]
    %v3164 = vld [vmem:[%s3 + $0x30] sm:$0xf]
    %v3165 = vld [vmem:[%s3 + $0x34] sm:$0xf]
    %v3166 = vld [vmem:[%s3 + $0x38] sm:$0xf]
    %v3167 = vld [vmem:[%s3 + $0x3c] sm:$0xf]
    %v3168 = vld [vmem:[%s3 + $0x40] sm:$0xf]
    %v3169 = vld [vmem:[%s3 + $0x44] sm:$0xf]
    %v3170 = vld [vmem:[%s3 + $0x48] sm:$0xf]
    %v3171 = vld [vmem:[%s3 + $0x4c] sm:$0xf]
    %v3172 = vld [vmem:[%s3 + $0x50] sm:$0xf]
    %v3173 = vld [vmem:[%s3 + $0x54] sm:$0xf]
    %v3174 = vld [vmem:[%s3 + $0x58] sm:$0xf]
    %v3175 = vld [vmem:[%s3 + $0x5c] sm:$0xf]
    %v3176 = vld [vmem:[%s3 + $0x60] sm:$0xf]
    %v3177 = vld [vmem:[%s3 + $0x64] sm:$0xf]
    %v3178 = vld [vmem:[%s3 + $0x68] sm:$0xf]
    %v3179 = vld [vmem:[%s3 + $0x6c] sm:$0xf]
    %v3180 = vld [vmem:[%s3 + $0x70] sm:$0xf]
    %v3181 = vld [vmem:[%s3 + $0x74] sm:$0xf]
    %v3182 = vld [vmem:[%s3 + $0x78] sm:$0xf]
    %v3183 = vld [vmem:[%s3 + $0x7c] sm:$0xf]
    %v3184 = vld [vmem:[%s3 + $0x80] sm:$0xf]
    %v3185 = vld [vmem:[%s3 + $0x84] sm:$0xf]
    %v3186 = vld [vmem:[%s3 + $0x88] sm:$0xf]
    %v3187 = vld [vmem:[%s3 + $0x8c] sm:$0xf]
    %v3188 = vld [vmem:[%s3 + $0x90] sm:$0xf]
    %v3189 = vld [vmem:[%s3 + $0x94] sm:$0xf]
    %v3190 = vld [vmem:[%s3 + $0x98] sm:$0xf]
    %v3191 = vld [vmem:[%s3 + $0x9c] sm:$0xf]
    %v3192 = vld [vmem:[%s3 + $0xa0] sm:$0xf]
    %v3193 = vld [vmem:[%s3 + $0xa4] sm:$0xf]
    %v3194 = vld [vmem:[%s3 + $0xa8] sm:$0xf]
    %v3195 = vld [vmem:[%s3 + $0xac] sm:$0xf]
    %v3196 = vld [vmem:[%s3 + $0xb0] sm:$0xf]
    %v3197 = vld [vmem:[%s3 + $0xb4] sm:$0xf]
    %v3198 = vld [vmem:[%s3 + $0xb8] sm:$0xf]
    %v3199 = vld [vmem:[%s3 + $0xbc] sm:$0xf]
    %v3200 = vld [vmem:[%s3 + $0xc0] sm:$0xf]
    %v3201 = vld [vmem:[%s3 + $0xc4] sm:$0xf]
    %v3202 = vld [vmem:[%s3 + $0xc8] sm:$0xf]
    %v3203 = vld [vmem:[%s3 + $0xcc] sm:$0xf]
    %v3204 = vld [vmem:[%s3 + $0xd0] sm:$0xf]
    %v3205 = vld [vmem:[%s3 + $0xd4] sm:$0xf]
    %v3206 = vld [vmem:[%s3 + $0xd8] sm:$0xf]
    %v3207 = vld [vmem:[%s3 + $0xdc] sm:$0xf]
    %v3208 = vld [vmem:[%s3 + $0xe0] sm:$0xf]
    %v3209 = vld [vmem:[%s3 + $0xe4] sm:$0xf]
    %v3210 = vld [vmem:[%s3 + $0xe8] sm:$0xf]
    %v3211 = vld [vmem:[%s3 + $0xec] sm:$0xf]
    %v3212 = vld [vmem:[%s3 + $0xf0] sm:$0xf]
    %v3213 = vld [vmem:[%s3 + $0xf4] sm:$0xf]
    %v3214 = vld [vmem:[%s3 + $0xf8] sm:$0xf]
    %v3215 = vld [vmem:[%s3 + $0xfc] sm:$0xf]
    %v3216 = vld [vmem:[%s3 + $0x100] sm:$0xf]
    %v3217 = vld [vmem:[%s3 + $0x104] sm:$0xf]
    %v3218 = vld [vmem:[%s3 + $0x108] sm:$0xf]
    %v3219 = vld [vmem:[%s3 + $0x10c] sm:$0xf]
    %v3220 = vld [vmem:[%s3 + $0x110] sm:$0xf]
    %v3221 = vld [vmem:[%s3 + $0x114] sm:$0xf]
    %v3222 = vld [vmem:[%s3 + $0x118] sm:$0xf]
    %v3223 = vld [vmem:[%s3 + $0x11c] sm:$0xf]
    %v3224 = vld [vmem:[%s3 + $0x120] sm:$0xf]
    %v3225 = vld [vmem:[%s3 + $0x124] sm:$0xf]
    %v3226 = vld [vmem:[%s3 + $0x128] sm:$0xf]
    %v3227 = vld [vmem:[%s3 + $0x12c] sm:$0xf]
    %v3228 = vld [vmem:[%s3 + $0x130] sm:$0xf]
    %v3229 = vld [vmem:[%s3 + $0x134] sm:$0xf]
    %v3230 = vld [vmem:[%s3 + $0x138] sm:$0xf]
    %v3231 = vld [vmem:[%s3 + $0x13c] sm:$0xf]
    %v3232 = vld [vmem:[%s3 + $0x140] sm:$0xf]
    %v3233 = vld [vmem:[%s3 + $0x144] sm:$0xf]
    %v3234 = vld [vmem:[%s3 + $0x148] sm:$0xf]
    %v3235 = vld [vmem:[%s3 + $0x14c] sm:$0xf]
    %v3236 = vld [vmem:[%s3 + $0x150] sm:$0xf]
    %v3237 = vld [vmem:[%s3 + $0x154] sm:$0xf]
    %v3238 = vld [vmem:[%s3 + $0x158] sm:$0xf]
    %v3239 = vld [vmem:[%s3 + $0x15c] sm:$0xf]
    %v3240 = vld [vmem:[%s3 + $0x160] sm:$0xf]
    %v3241 = vld [vmem:[%s3 + $0x164] sm:$0xf]
    %v3242 = vld [vmem:[%s3 + $0x168] sm:$0xf]
    %v3243 = vld [vmem:[%s3 + $0x16c] sm:$0xf]
    %v3244 = vld [vmem:[%s3 + $0x170] sm:$0xf]
    %v3245 = vld [vmem:[%s3 + $0x174] sm:$0xf]
    %v3246 = vld [vmem:[%s3 + $0x178] sm:$0xf]
    %v3247 = vld [vmem:[%s3 + $0x17c] sm:$0xf]
    %v3248 = vld [vmem:[%s3 + $0x180] sm:$0xf]
    %v3249 = vld [vmem:[%s3 + $0x184] sm:$0xf]
    %v3250 = vld [vmem:[%s3 + $0x188] sm:$0xf]
    %v3251 = vld [vmem:[%s3 + $0x18c] sm:$0xf]
    %v3252 = vld [vmem:[%s3 + $0x190] sm:$0xf]
    %v3253 = vld [vmem:[%s3 + $0x194] sm:$0xf]
    %v3254 = vld [vmem:[%s3 + $0x198] sm:$0xf]
    %v3255 = vld [vmem:[%s3 + $0x19c] sm:$0xf]
    %v3256 = vld [vmem:[%s3 + $0x1a0] sm:$0xf]
    %v3257 = vld [vmem:[%s3 + $0x1a4] sm:$0xf]
    %v3258 = vld [vmem:[%s3 + $0x1a8] sm:$0xf]
    %v3259 = vld [vmem:[%s3 + $0x1ac] sm:$0xf]
    %v3260 = vld [vmem:[%s3 + $0x1b0] sm:$0xf]
    %v3261 = vld [vmem:[%s3 + $0x1b4] sm:$0xf]
    %v3262 = vld [vmem:[%s3 + $0x1b8] sm:$0xf]
    %v3263 = vld [vmem:[%s3 + $0x1bc] sm:$0xf]
    %v3264 = vld [vmem:[%s3 + $0x1c0] sm:$0xf]
    %v3265 = vld [vmem:[%s3 + $0x1c4] sm:$0xf]
    %v3266 = vld [vmem:[%s3 + $0x1c8] sm:$0xf]
    %v3267 = vld [vmem:[%s3 + $0x1cc] sm:$0xf]
    %v3268 = vld [vmem:[%s3 + $0x1d0] sm:$0xf]
    %v3269 = vld [vmem:[%s3 + $0x1d4] sm:$0xf]
    %v3270 = vld [vmem:[%s3 + $0x1d8] sm:$0xf]
    %v3271 = vld [vmem:[%s3 + $0x1dc] sm:$0xf]
    %v3272 = vld [vmem:[%s3 + $0x1e0] sm:$0xf]
    %v3273 = vld [vmem:[%s3 + $0x1e4] sm:$0xf]
    %v3274 = vld [vmem:[%s3 + $0x1e8] sm:$0xf]
    %v3275 = vld [vmem:[%s3 + $0x1ec] sm:$0xf]
    %v3276 = vld [vmem:[%s3 + $0x1f0] sm:$0xf]
    %v3277 = vld [vmem:[%s3 + $0x1f4] sm:$0xf]
    %v3278 = vld [vmem:[%s3 + $0x1f8] sm:$0xf]
    %v3279 = vld [vmem:[%s3 + $0x1fc] sm:$0xf]
    %v3280 = vld [vmem:[%s4] sm:$0x1]
    %v3282 = vlaneseq
    %v3283 = vshrl.u32 %v3282, 7
    %v3284 = vsub.s32 0, %v3283
    %v3285 = vrot.slane %v3280, %v3284
    %v3415 = vunpack.c.l.b16 %v3152
    %v3416 = vunpack.c.l.b16 %v3153
    %v3417 = vunpack.c.l.b16 %v3154
    %v3418 = vunpack.c.l.b16 %v3155
    %v3419 = vunpack.c.l.b16 %v3156
    %v3420 = vunpack.c.l.b16 %v3157
    %v3421 = vunpack.c.l.b16 %v3158
    %v3422 = vunpack.c.l.b16 %v3159
    %v3423 = vunpack.c.l.b16 %v3160
    %v3424 = vunpack.c.l.b16 %v3161
    %v3425 = vunpack.c.l.b16 %v3162
    %v3426 = vunpack.c.l.b16 %v3163
    %v3427 = vunpack.c.l.b16 %v3164
    %v3428 = vunpack.c.l.b16 %v3165
    %v3429 = vunpack.c.l.b16 %v3166
    %v3430 = vunpack.c.l.b16 %v3167
    %v3431 = vunpack.c.l.b16 %v3168
    %v3432 = vunpack.c.l.b16 %v3169
    %v3433 = vunpack.c.l.b16 %v3170
    %v3434 = vunpack.c.l.b16 %v3171
    %v3435 = vunpack.c.l.b16 %v3172
    %v3436 = vunpack.c.l.b16 %v3173
    %v3437 = vunpack.c.l.b16 %v3174
    %v3438 = vunpack.c.l.b16 %v3175
    %v3439 = vunpack.c.l.b16 %v3176
    %v3440 = vunpack.c.l.b16 %v3177
    %v3441 = vunpack.c.l.b16 %v3178
    %v3442 = vunpack.c.l.b16 %v3179
    %v3443 = vunpack.c.l.b16 %v3180
    %v3444 = vunpack.c.l.b16 %v3181
    %v3445 = vunpack.c.l.b16 %v3182
    %v3446 = vunpack.c.l.b16 %v3183
    %v3447 = vunpack.c.l.b16 %v3184
    %v3448 = vunpack.c.l.b16 %v3185
    %v3449 = vunpack.c.l.b16 %v3186
    %v3450 = vunpack.c.l.b16 %v3187
    %v3451 = vunpack.c.l.b16 %v3188
    %v3452 = vunpack.c.l.b16 %v3189
    %v3453 = vunpack.c.l.b16 %v3190
    %v3454 = vunpack.c.l.b16 %v3191
    %v3455 = vunpack.c.l.b16 %v3192
    %v3456 = vunpack.c.l.b16 %v3193
    %v3457 = vunpack.c.l.b16 %v3194
    %v3458 = vunpack.c.l.b16 %v3195
    %v3459 = vunpack.c.l.b16 %v3196
    %v3460 = vunpack.c.l.b16 %v3197
    %v3461 = vunpack.c.l.b16 %v3198
    %v3462 = vunpack.c.l.b16 %v3199
    %v3463 = vunpack.c.l.b16 %v3200
    %v3464 = vunpack.c.l.b16 %v3201
    %v3465 = vunpack.c.l.b16 %v3202
    %v3466 = vunpack.c.l.b16 %v3203
    %v3467 = vunpack.c.l.b16 %v3204
    %v3468 = vunpack.c.l.b16 %v3205
    %v3469 = vunpack.c.l.b16 %v3206
    %v3470 = vunpack.c.l.b16 %v3207
    %v3471 = vunpack.c.l.b16 %v3208
    %v3472 = vunpack.c.l.b16 %v3209
    %v3473 = vunpack.c.l.b16 %v3210
    %v3474 = vunpack.c.l.b16 %v3211
    %v3475 = vunpack.c.l.b16 %v3212
    %v3476 = vunpack.c.l.b16 %v3213
    %v3477 = vunpack.c.l.b16 %v3214
    %v3478 = vunpack.c.l.b16 %v3215
    %v3479 = vunpack.c.l.b16 %v3216
    %v3480 = vunpack.c.l.b16 %v3217
    %v3481 = vunpack.c.l.b16 %v3218
    %v3482 = vunpack.c.l.b16 %v3219
    %v3483 = vunpack.c.l.b16 %v3220
    %v3484 = vunpack.c.l.b16 %v3221
    %v3485 = vunpack.c.l.b16 %v3222
    %v3486 = vunpack.c.l.b16 %v3223
    %v3487 = vunpack.c.l.b16 %v3224
    %v3488 = vunpack.c.l.b16 %v3225
    %v3489 = vunpack.c.l.b16 %v3226
    %v3490 = vunpack.c.l.b16 %v3227
    %v3491 = vunpack.c.l.b16 %v3228
    %v3492 = vunpack.c.l.b16 %v3229
    %v3493 = vunpack.c.l.b16 %v3230
    %v3494 = vunpack.c.l.b16 %v3231
    %v3495 = vunpack.c.l.b16 %v3232
    %v3496 = vunpack.c.l.b16 %v3233
    %v3497 = vunpack.c.l.b16 %v3234
    %v3498 = vunpack.c.l.b16 %v3235
    %v3499 = vunpack.c.l.b16 %v3236
    %v3500 = vunpack.c.l.b16 %v3237
    %v3501 = vunpack.c.l.b16 %v3238
    %v3502 = vunpack.c.l.b16 %v3239
    %v3503 = vunpack.c.l.b16 %v3240
    %v3504 = vunpack.c.l.b16 %v3241
    %v3505 = vunpack.c.l.b16 %v3242
    %v3506 = vunpack.c.l.b16 %v3243
    %v3507 = vunpack.c.l.b16 %v3244
    %v3508 = vunpack.c.l.b16 %v3245
    %v3509 = vunpack.c.l.b16 %v3246
    %v3510 = vunpack.c.l.b16 %v3247
    %v3511 = vunpack.c.l.b16 %v3248
    %v3512 = vunpack.c.l.b16 %v3249
    %v3513 = vunpack.c.l.b16 %v3250
    %v3514 = vunpack.c.l.b16 %v3251
    %v3515 = vunpack.c.l.b16 %v3252
    %v3516 = vunpack.c.l.b16 %v3253
    %v3517 = vunpack.c.l.b16 %v3254
    %v3518 = vunpack.c.l.b16 %v3255
    %v3519 = vunpack.c.l.b16 %v3256
    %v3520 = vunpack.c.l.b16 %v3257
    %v3521 = vunpack.c.l.b16 %v3258
    %v3522 = vunpack.c.l.b16 %v3259
    %v3523 = vunpack.c.l.b16 %v3260
    %v3524 = vunpack.c.l.b16 %v3261
    %v3525 = vunpack.c.l.b16 %v3262
    %v3526 = vunpack.c.l.b16 %v3263
    %v3527 = vunpack.c.l.b16 %v3264
    %v3528 = vunpack.c.l.b16 %v3265
    %v3529 = vunpack.c.l.b16 %v3266
    %v3530 = vunpack.c.l.b16 %v3267
    %v3531 = vunpack.c.l.b16 %v3268
    %v3532 = vunpack.c.l.b16 %v3269
    %v3533 = vunpack.c.l.b16 %v3270
    %v3534 = vunpack.c.l.b16 %v3271
    %v3535 = vunpack.c.l.b16 %v3272
    %v3536 = vunpack.c.l.b16 %v3273
    %v3537 = vunpack.c.l.b16 %v3274
    %v3538 = vunpack.c.l.b16 %v3275
    %v3539 = vunpack.c.l.b16 %v3276
    %v3540 = vunpack.c.l.b16 %v3277
    %v3541 = vunpack.c.l.b16 %v3278
    %v3542 = vunpack.c.l.b16 %v3279
    %v3543 = vpack.c.b16 %v3416, %v3415
    %v3544 = vpack.c.b16 %v3418, %v3417
    %v3545 = vpack.c.b16 %v3420, %v3419
    %v3546 = vpack.c.b16 %v3422, %v3421
    %v3547 = vpack.c.b16 %v3424, %v3423
    %v3548 = vpack.c.b16 %v3426, %v3425
    %v3549 = vpack.c.b16 %v3428, %v3427
    %v3550 = vpack.c.b16 %v3430, %v3429
    %v3551 = vpack.c.b16 %v3432, %v3431
    %v3552 = vpack.c.b16 %v3434, %v3433
    %v3553 = vpack.c.b16 %v3436, %v3435
    %v3554 = vpack.c.b16 %v3438, %v3437
    %v3555 = vpack.c.b16 %v3440, %v3439
    %v3556 = vpack.c.b16 %v3442, %v3441
    %v3557 = vpack.c.b16 %v3444, %v3443
    %v3558 = vpack.c.b16 %v3446, %v3445
    %v3559 = vpack.c.b16 %v3448, %v3447
    %v3560 = vpack.c.b16 %v3450, %v3449
    %v3561 = vpack.c.b16 %v3452, %v3451
    %v3562 = vpack.c.b16 %v3454, %v3453
    %v3563 = vpack.c.b16 %v3456, %v3455
    %v3564 = vpack.c.b16 %v3458, %v3457
    %v3565 = vpack.c.b16 %v3460, %v3459
    %v3566 = vpack.c.b16 %v3462, %v3461
    %v3567 = vpack.c.b16 %v3464, %v3463
    %v3568 = vpack.c.b16 %v3466, %v3465
    %v3569 = vpack.c.b16 %v3468, %v3467
    %v3570 = vpack.c.b16 %v3470, %v3469
    %v3571 = vpack.c.b16 %v3472, %v3471
    %v3572 = vpack.c.b16 %v3474, %v3473
    %v3573 = vpack.c.b16 %v3476, %v3475
    %v3574 = vpack.c.b16 %v3478, %v3477
    %v3575 = vpack.c.b16 %v3480, %v3479
    %v3576 = vpack.c.b16 %v3482, %v3481
    %v3577 = vpack.c.b16 %v3484, %v3483
    %v3578 = vpack.c.b16 %v3486, %v3485
    %v3579 = vpack.c.b16 %v3488, %v3487
    %v3580 = vpack.c.b16 %v3490, %v3489
    %v3581 = vpack.c.b16 %v3492, %v3491
    %v3582 = vpack.c.b16 %v3494, %v3493
    %v3583 = vpack.c.b16 %v3496, %v3495
    %v3584 = vpack.c.b16 %v3498, %v3497
    %v3585 = vpack.c.b16 %v3500, %v3499
    %v3586 = vpack.c.b16 %v3502, %v3501
    %v3587 = vpack.c.b16 %v3504, %v3503
    %v3588 = vpack.c.b16 %v3506, %v3505
    %v3589 = vpack.c.b16 %v3508, %v3507
    %v3590 = vpack.c.b16 %v3510, %v3509
    %v3591 = vpack.c.b16 %v3512, %v3511
    %v3592 = vpack.c.b16 %v3514, %v3513
    %v3593 = vpack.c.b16 %v3516, %v3515
    %v3594 = vpack.c.b16 %v3518, %v3517
    %v3595 = vpack.c.b16 %v3520, %v3519
    %v3596 = vpack.c.b16 %v3522, %v3521
    %v3597 = vpack.c.b16 %v3524, %v3523
    %v3598 = vpack.c.b16 %v3526, %v3525
    %v3599 = vpack.c.b16 %v3528, %v3527
    %v3600 = vpack.c.b16 %v3530, %v3529
    %v3601 = vpack.c.b16 %v3532, %v3531
    %v3602 = vpack.c.b16 %v3534, %v3533
    %v3603 = vpack.c.b16 %v3536, %v3535
    %v3604 = vpack.c.b16 %v3538, %v3537
    %v3605 = vpack.c.b16 %v3540, %v3539
    %v3606 = vpack.c.b16 %v3542, %v3541
    %3671 = vmatprep.subr.bf16.mxu0 0
    %3672 = vmatpush1.bf16.msra.mxu0 %v3543
    %3673 = vmatprep.subr.bf16.mxu0 0
    %3674 = vmatpush1.bf16.msra.mxu0 %v3544
    %3675 = vmatprep.subr.bf16.mxu0 0
    %3676 = vmatpush1.bf16.msra.mxu0 %v3545
    %3677 = vmatprep.subr.bf16.mxu0 0
    %3678 = vmatpush1.bf16.msra.mxu0 %v3546
    %3679 = vmatprep.subr.bf16.mxu0 0
    %3680 = vmatpush1.bf16.msra.mxu0 %v3547
    %3681 = vmatprep.subr.bf16.mxu0 0
    %3682 = vmatpush1.bf16.msra.mxu0 %v3548
    %3683 = vmatprep.subr.bf16.mxu0 0
    %3684 = vmatpush1.bf16.msra.mxu0 %v3549
    %3685 = vmatprep.subr.bf16.mxu0 0
    %3686 = vmatpush1.bf16.msra.mxu0 %v3550
    %3687 = vmatprep.subr.bf16.mxu0 0
    %3688 = vmatpush1.bf16.msra.mxu0 %v3551
    %3689 = vmatprep.subr.bf16.mxu0 0
    %3690 = vmatpush1.bf16.msra.mxu0 %v3552
    %3691 = vmatprep.subr.bf16.mxu0 0
    %3692 = vmatpush1.bf16.msra.mxu0 %v3553
    %3693 = vmatprep.subr.bf16.mxu0 0
    %3694 = vmatpush1.bf16.msra.mxu0 %v3554
    %3695 = vmatprep.subr.bf16.mxu0 0
    %3696 = vmatpush1.bf16.msra.mxu0 %v3555
    %3697 = vmatprep.subr.bf16.mxu0 0
    %3698 = vmatpush1.bf16.msra.mxu0 %v3556
    %3699 = vmatprep.subr.bf16.mxu0 0
    %3700 = vmatpush1.bf16.msra.mxu0 %v3557
    %3701 = vmatprep.subr.bf16.mxu0 0
    %3702 = vmatpush1.bf16.msra.mxu0 %v3558
    %3703 = vmatprep.mubr.bf16.mxu0 %v3145
    %3704 = vmatmul.mubr.bf16.gmra.mrb[0].mxu0 %v3144
    %v3705 = vpop.f32.mrb[0].mxu0
    %v3706 = vadd.f32 %v3285, %v3705
    %v3707 = vpop.f32.mrb[0].mxu0
    %v3708 = vpop.f32.mrb[0].mxu0
    %v3709 = vpop.f32.mrb[0].mxu0
    %3710 = vdwg.mxu0
    %3711 = vmatprep.subr.bf16.mxu0 0
    %3712 = vmatpush1.bf16.msra.mxu0 %v3559
    %3713 = vmatprep.subr.bf16.mxu0 0
    %3714 = vmatpush1.bf16.msra.mxu0 %v3560
    %3715 = vmatprep.subr.bf16.mxu0 0
    %3716 = vmatpush1.bf16.msra.mxu0 %v3561
    %3717 = vmatprep.subr.bf16.mxu0 0
    %3718 = vmatpush1.bf16.msra.mxu0 %v3562
    %3719 = vmatprep.subr.bf16.mxu0 0
    %3720 = vmatpush1.bf16.msra.mxu0 %v3563
    %3721 = vmatprep.subr.bf16.mxu0 0
    %3722 = vmatpush1.bf16.msra.mxu0 %v3564
    %3723 = vmatprep.subr.bf16.mxu0 0
    %3724 = vmatpush1.bf16.msra.mxu0 %v3565
    %3725 = vmatprep.subr.bf16.mxu0 0
    %3726 = vmatpush1.bf16.msra.mxu0 %v3566
    %3727 = vmatprep.subr.bf16.mxu0 0
    %3728 = vmatpush1.bf16.msra.mxu0 %v3567
    %3729 = vmatprep.subr.bf16.mxu0 0
    %3730 = vmatpush1.bf16.msra.mxu0 %v3568
    %3731 = vmatprep.subr.bf16.mxu0 0
    %3732 = vmatpush1.bf16.msra.mxu0 %v3569
    %3733 = vmatprep.subr.bf16.mxu0 0
    %3734 = vmatpush1.bf16.msra.mxu0 %v3570
    %3735 = vmatprep.subr.bf16.mxu0 0
    %3736 = vmatpush1.bf16.msra.mxu0 %v3571
    %3737 = vmatprep.subr.bf16.mxu0 0
    %3738 = vmatpush1.bf16.msra.mxu0 %v3572
    %3739 = vmatprep.subr.bf16.mxu0 0
    %3740 = vmatpush1.bf16.msra.mxu0 %v3573
    %3741 = vmatprep.subr.bf16.mxu0 0
    %3742 = vmatpush1.bf16.msra.mxu0 %v3574
    %3743 = vmatprep.mubr.bf16.mxu0 %v3147
    %3744 = vmatmul.mubr.bf16.gmra.mrb[0].mxu0 %v3146
    %v3745 = vpop.f32.mrb[0].mxu0
    %v3746 = vadd.f32 %v3706, %v3745
    %v3747 = vpop.f32.mrb[0].mxu0
    %v3748 = vpop.f32.mrb[0].mxu0
    %v3749 = vpop.f32.mrb[0].mxu0
    %3750 = vdwg.mxu0
    %3751 = vmatprep.subr.bf16.mxu0 0
    %3752 = vmatpush1.bf16.msra.mxu0 %v3575
    %3753 = vmatprep.subr.bf16.mxu0 0
    %3754 = vmatpush1.bf16.msra.mxu0 %v3576
    %3755 = vmatprep.subr.bf16.mxu0 0
    %3756 = vmatpush1.bf16.msra.mxu0 %v3577
    %3757 = vmatprep.subr.bf16.mxu0 0
    %3758 = vmatpush1.bf16.msra.mxu0 %v3578
    %3759 = vmatprep.subr.bf16.mxu0 0
    %3760 = vmatpush1.bf16.msra.mxu0 %v3579
    %3761 = vmatprep.subr.bf16.mxu0 0
    %3762 = vmatpush1.bf16.msra.mxu0 %v3580
    %3763 = vmatprep.subr.bf16.mxu0 0
    %3764 = vmatpush1.bf16.msra.mxu0 %v3581
    %3765 = vmatprep.subr.bf16.mxu0 0
    %3766 = vmatpush1.bf16.msra.mxu0 %v3582
    %3767 = vmatprep.subr.bf16.mxu0 0
    %3768 = vmatpush1.bf16.msra.mxu0 %v3583
    %3769 = vmatprep.subr.bf16.mxu0 0
    %3770 = vmatpush1.bf16.msra.mxu0 %v3584
    %3771 = vmatprep.subr.bf16.mxu0 0
    %3772 = vmatpush1.bf16.msra.mxu0 %v3585
    %3773 = vmatprep.subr.bf16.mxu0 0
    %3774 = vmatpush1.bf16.msra.mxu0 %v3586
    %3775 = vmatprep.subr.bf16.mxu0 0
    %3776 = vmatpush1.bf16.msra.mxu0 %v3587
    %3777 = vmatprep.subr.bf16.mxu0 0
    %3778 = vmatpush1.bf16.msra.mxu0 %v3588
    %3779 = vmatprep.subr.bf16.mxu0 0
    %3780 = vmatpush1.bf16.msra.mxu0 %v3589
    %3781 = vmatprep.subr.bf16.mxu0 0
    %3782 = vmatpush1.bf16.msra.mxu0 %v3590
    %3783 = vmatprep.mubr.bf16.mxu0 %v3149
    %3784 = vmatmul.mubr.bf16.gmra.mrb[0].mxu0 %v3148
    %v3785 = vpop.f32.mrb[0].mxu0
    %v3786 = vadd.f32 %v3746, %v3785
    %v3787 = vpop.f32.mrb[0].mxu0
    %v3788 = vpop.f32.mrb[0].mxu0
    %v3789 = vpop.f32.mrb[0].mxu0
    %3790 = vdwg.mxu0
    %3791 = vmatprep.subr.bf16.mxu0 0
    %3792 = vmatpush1.bf16.msra.mxu0 %v3591
    %3793 = vmatprep.subr.bf16.mxu0 0
    %3794 = vmatpush1.bf16.msra.mxu0 %v3592
    %3795 = vmatprep.subr.bf16.mxu0 0
    %3796 = vmatpush1.bf16.msra.mxu0 %v3593
    %3797 = vmatprep.subr.bf16.mxu0 0
    %3798 = vmatpush1.bf16.msra.mxu0 %v3594
    %3799 = vmatprep.subr.bf16.mxu0 0
    %3800 = vmatpush1.bf16.msra.mxu0 %v3595
    %3801 = vmatprep.subr.bf16.mxu0 0
    %3802 = vmatpush1.bf16.msra.mxu0 %v3596
    %3803 = vmatprep.subr.bf16.mxu0 0
    %3804 = vmatpush1.bf16.msra.mxu0 %v3597
    %3805 = vmatprep.subr.bf16.mxu0 0
    %3806 = vmatpush1.bf16.msra.mxu0 %v3598
    %3807 = vmatprep.subr.bf16.mxu0 0
    %3808 = vmatpush1.bf16.msra.mxu0 %v3599
    %3809 = vmatprep.subr.bf16.mxu0 0
    %3810 = vmatpush1.bf16.msra.mxu0 %v3600
    %3811 = vmatprep.subr.bf16.mxu0 0
    %3812 = vmatpush1.bf16.msra.mxu0 %v3601
    %3813 = vmatprep.subr.bf16.mxu0 0
    %3814 = vmatpush1.bf16.msra.mxu0 %v3602
    %3815 = vmatprep.subr.bf16.mxu0 0
    %3816 = vmatpush1.bf16.msra.mxu0 %v3603
    %3817 = vmatprep.subr.bf16.mxu0 0
    %3818 = vmatpush1.bf16.msra.mxu0 %v3604
    %3819 = vmatprep.subr.bf16.mxu0 0
    %3820 = vmatpush1.bf16.msra.mxu0 %v3605
    %3821 = vmatprep.subr.bf16.mxu0 0
    %3822 = vmatpush1.bf16.msra.mxu0 %v3606
    %3823 = vmatprep.mubr.bf16.mxu0 %v3151
    %3824 = vmatmul.mubr.bf16.gmra.mrb[0].mxu0 %v3150
    %v3825 = vpop.f32.mrb[0].mxu0
    %v3826 = vadd.f32 %v3786, %v3825
    %v3827 = vpop.f32.mrb[0].mxu0
    %v3828 = vpop.f32.mrb[0].mxu0
    %v3829 = vpop.f32.mrb[0].mxu0
    %3830 = vdwg.mxu0
    %3831 = vmax.xlane.f32.xlu0 %v3826
    %v3832 = vpop.xlane.xlu0 %3831
    %v3833 = vsub.f32 %v3826, %v3832
    %v3834 = vmul.f32 %v3833, 1.442695
    %v3835 = vpow.pop %v3834
    %3836 = vadd.xlane.f32.xlu0 %v3835
    %v3837 = vpop.xlane.xlu0 %3836
    %v3838 = vlog2.pop %v3837
    %v3839 = vmul.f32 %v3838, 0.6931472
    %v3840 = vsub.f32 %v3833, %v3839
    %3841 = vst [vmem:[#allocation2] sm:$0xff] %v3840
    // Predicated region
    $region22: #{mynet_forward.1} parent=1 // pred_check
      _
    $region23: #{mynet_forward.1} parent=1 // pred_check_branch
      %3843 = sbr.rel (0) target = $region25
    $region24: #{mynet_forward.1} parent=1 // pred_region
      %s3845 = ssub.s32 128, 128
      %3846 = vsyncadd [#allocation3], %s3845
      %s3848 = sshll.u32 [#allocation2], 4
      %s3849 = int_to_ptr.vmem [resolvable:$true] %s3848
      %3851 = dma.vmem_to_hbm [thread:$0]  %s3849, 128, %s5, [#allocation3]
    $region25: #{mynet_forward.1} parent=1 // pred_fallthru
      _
    // Predicated region
    $region26: #{mynet_forward.1} parent=1 // pred_check
      _
    $region27: #{mynet_forward.1} parent=1 // pred_check_branch
      %3853 = sbr.rel (0) target = $region29
    $region28: #{mynet_forward.1} parent=1 // pred_region
      %3854 = dma.done [#allocation3], 128
    $region29: #{mynet_forward.1} parent=1 // pred_fallthru
      _
    %3855 = vsyncpa [#allocation3], 1

</llo_original>
